<compile_context>
chip_gen: v6e
topology: v6e:2x2x1
jax: 0.10.0
libtpu: 0.0.40
codegen_flags: <defaults>
</compile_context>

<pallas_src>
import functools

import jax
import jax.numpy as jnp
from jax.experimental import pallas as pl
from jax.experimental.pallas import tpu as pltpu

LN_EPS = 1e-5  # nn.LayerNorm default


def _round_up(x, m):
    return ((x + m - 1) // m) * m


def _linear_block_kernel(residual, inv_hidden, *refs):
    if residual:
        (x_ref, w1_ref, b1_ref, g_ref, beta_ref,
         w2h_ref, w2x_ref, b2_ref, o_ref) = refs
    else:
        (x_ref, w1_ref, b1_ref, g_ref, beta_ref,
         w2h_ref, b2_ref, o_ref) = refs
        w2x_ref = None

    # bf16 MXU operand (in-register cast, no extra HBM pass); f32 accumulation.
    x_bf = x_ref[...].astype(jnp.bfloat16)

    # ---- layer1: x @ W1 + b1 ----
    h = jnp.dot(x_bf, w1_ref[...], preferred_element_type=jnp.float32)
    h = h + b1_ref[...]

    # ---- LayerNorm over the true hidden width.  Padded hidden columns are
    #      exactly 0 and inv_hidden = 1/true_hidden, so single-pass moments are
    #      correct; clamp guards against cancellation-induced negative var. ----
    mean = jnp.sum(h, axis=-1, keepdims=True) * inv_hidden
    ex2 = jnp.sum(h * h, axis=-1, keepdims=True) * inv_hidden
    var = jnp.maximum(ex2 - mean * mean, 0.0)
    r = jax.lax.rsqrt(var + LN_EPS)
    # fused affine: h * scale + shift  (scale = gamma*r, shift = beta - mean*scale)
    scale = g_ref[...] * r
    shift = beta_ref[...] - mean * scale
    h = h * scale + shift

    # ---- ReLU (dropout1 / dropout2 are identity: p_drop = 0.0 / eval mode) ----
    h = jnp.maximum(h, 0.0)

    # ---- layer2: concat([h, x]) @ W2 + b2 == h @ W2_h + x @ W2_x + b2 ----
    out = jnp.dot(h.astype(jnp.bfloat16), w2h_ref[...],
                  preferred_element_type=jnp.float32)
    out = out + b2_ref[...]
    if residual:
        out = out + jnp.dot(x_bf, w2x_ref[...],
                            preferred_element_type=jnp.float32)

    o_ref[...] = out.astype(o_ref.dtype)


def prepare_params(torch_params, input_dim, hidden_dim, output_dim, residual):
    """One-time (init-time) layout / dtype prep, hoisted out of the forward path.

    torch_params follow the nn.Module layout:
      w1_t (hidden, in), b1 (hidden,), gamma (hidden,), beta (hidden,),
      w2_t (out, layer2_dim), b2 (out,)
    """
    w1_t, b1, gamma, beta, w2_t, b2 = torch_params

    w1 = w1_t.T                       # (in, hidden):   y = x @ W.T + b
    w2 = w2_t.T                       # (layer2_dim, out)
    w2h = w2[:hidden_dim]
    w2x = w2[hidden_dim:] if residual else None

    d_hid_p = _round_up(hidden_dim, 128)
    if output_dim >= 128 and output_dim % 128 != 0:
        d_out_p = _round_up(output_dim, 128)   # lane-dense stores for wide outputs
    else:
        d_out_p = output_dim                   # small d_out: avoid 4x write traffic
    ph = d_hid_p - hidden_dim
    po = d_out_p - output_dim

    w1 = jnp.pad(w1, ((0, 0), (0, ph)))
    w2h = jnp.pad(w2h, ((0, ph), (0, po)))
    if residual:
        w2x = jnp.pad(w2x, ((0, 0), (0, po)))
    b1 = jnp.pad(b1, ((0, ph),)).reshape(1, d_hid_p)
    gamma = jnp.pad(gamma, ((0, ph),)).reshape(1, d_hid_p)
    beta = jnp.pad(beta, ((0, ph),)).reshape(1, d_hid_p)
    b2 = jnp.pad(b2, ((0, po),)).reshape(1, d_out_p)

    return dict(
        w1=w1.astype(jnp.bfloat16),            # bf16 matmul weights
        w2h=w2h.astype(jnp.bfloat16),
        w2x=None if w2x is None else w2x.astype(jnp.bfloat16),
        b1=b1.astype(jnp.float32),             # f32 biases / LN params (tiny)
        gamma=gamma.astype(jnp.float32),
        beta=beta.astype(jnp.float32),
        b2=b2.astype(jnp.float32),
        residual=residual,
        hidden_dim=hidden_dim,
        output_dim=output_dim,
    )


def linear_forward(x, p, *, block_m=512):
    """x: (..., input_dim) -> (..., output_dim)."""
    residual = p["residual"]
    w1, b1, gamma, beta = p["w1"], p["b1"], p["gamma"], p["beta"]
    w2h, w2x, b2 = p["w2h"], p["w2x"], p["b2"]

    lead_shape = x.shape[:-1]
    d_in = x.shape[-1]
    assert w1.shape[0] == d_in, "input_dim mismatch"
    d_hid_p = w1.shape[-1]
    d_out_p = w2h.shape[-1]
    d_out = p["output_dim"]
    inv_hidden = 1.0 / p["hidden_dim"]

    n = 1
    for d in lead_shape:
        n *= d
    x2d = x.reshape(n, d_in)
    x_item = x.dtype.itemsize

    # ---- resident weight footprint (bf16 matrices + f32 vectors) ----
    w_bytes = (d_in * d_hid_p + d_hid_p * d_out_p) * 2 + (3 * d_hid_p + d_out_p) * 4
    if residual:
        w_bytes += d_in * d_out_p * 2

    # ---- generation-aware VMEM budget & row tile ----
    try:
        vmem_cap = int(pltpu.get_tpu_info().vmem_capacity_bytes)
    except Exception:
        vmem_cap = 64 << 20                # conservative (v7x per-TensorCore)
    usable = int(0.85 * vmem_cap)

    # per-row bytes: double-buffered x / out streams + f32/bf16 intermediates
    per_row = (2 * d_in * x_item + 2 * d_out_p * x_item
               + (3 * d_hid_p + 2 * d_out_p + d_in) * 4)
    budget = int(0.8 * usable) - 2 * w_bytes   # worst case: double-buffered consts
    tm_vmem = max(8, (budget // per_row) // 8 * 8) if budget > 8 * per_row else 8

    n8 = _round_up(n, 8)
    tm = min(block_m, n8, tm_vmem)
    if n8 > 8:                              # >= 2 grid steps -> both v7x TCs busy
        tm = min(tm, _round_up(pl.cdiv(n8, 2), 8))
    tm = max(8, tm)

    n_pad = _round_up(n, tm)
    if n_pad != n:
        x2d = jnp.pad(x2d, ((0, n_pad - n), (0, 0)))
    grid = (n_pad // tm,)

    vmem_limit = min(usable,
                     max(32 << 20,
                         int(1.3 * (2 * w_bytes + tm * per_row)) + (2 << 20)))

    flops = 2 * n_pad * (d_in * d_hid_p + d_hid_p * d_out_p)
    if residual:
        flops += 2 * n_pad * d_in * d_out_p
    bytes_accessed = n_pad * (d_in + d_out_p) * x_item + w_bytes
    cost = pl.CostEstimate(flops=flops, transcendentals=n_pad,
                           bytes_accessed=bytes_accessed)

    kernel = functools.partial(_linear_block_kernel, residual, inv_hidden)

    operands = [x2d, w1, b1, gamma, beta, w2h]
    const_shapes = [(d_in, d_hid_p), (1, d_hid_p), (1, d_hid_p), (1, d_hid_p),
                    (d_hid_p, d_out_p)]
    if residual:
        operands.append(w2x)
        const_shapes.append((d_in, d_out_p))
    operands.append(b2)
    const_shapes.append((1, d_out_p))

    def run(single_buffer_consts):
        def const_spec(shape):
            if single_buffer_consts:
                return pl.BlockSpec(shape, lambda i: (0, 0),
                                    pipeline_mode=pl.Buffered(1))
            return pl.BlockSpec(shape, lambda i: (0, 0))

        in_specs = [pl.BlockSpec((tm, d_in), lambda i: (i, 0))]
        in_specs += [const_spec(s) for s in const_shapes]
        out_specs = pl.BlockSpec((tm, d_out_p), lambda i: (i, 0))

        return pl.pallas_call(
            kernel,
            out_shape=jax.ShapeDtypeStruct((n_pad, d_out_p), x.dtype),
            grid_spec=pltpu.PrefetchScalarGridSpec(
                num_scalar_prefetch=0,
                grid=grid,
                in_specs=in_specs,
                out_specs=out_specs,
            ),
            compiler_params=pltpu.CompilerParams(
                dimension_semantics=("parallel",),
                vmem_limit_bytes=vmem_limit,
            ),
            cost_estimate=cost,
        )(*operands)

    try:
        out2d = jax.block_until_ready(run(True))
    except Exception:
        # TODO(synk): pipeline_mode=pl.Buffered(1) not supported by this jax
        # build; fall back to default double-buffered resident weight blocks.
        out2d = run(False)

    if n_pad != n:
        out2d = out2d[:n]
    if d_out_p != d_out:
        out2d = out2d[:, :d_out]
    return out2d.reshape(*lead_shape, d_out)


def init_torch_params(key, input_dim, hidden_dim, output_dim, residual):
    """Deterministic synthetic parameters in the PyTorch nn.Module layout."""
    layer2_dim = hidden_dim + input_dim if residual else hidden_dim
    k1, k2, k3, k4, k5, k6 = jax.random.split(key, 6)
    w1_t = jax.random.normal(k1, (hidden_dim, input_dim), jnp.float32) * 0.1
    b1 = jax.random.normal(k2, (hidden_dim,), jnp.float32) * 0.1
    gamma = 1.0 + 0.1 * jax.random.normal(k3, (hidden_dim,), jnp.float32)
    beta = 0.1 * jax.random.normal(k4, (hidden_dim,), jnp.float32)
    w2_t = jax.random.normal(k5, (output_dim, layer2_dim), jnp.float32) * 0.1
    b2 = jax.random.normal(k6, (output_dim,), jnp.float32) * 0.1
    return (w1_t, b1, gamma, beta, w2_t, b2)


def _reference(x, torch_params, residual):
    """Plain-JAX f32 reference of the module forward (dropout p=0 -> identity)."""
    w1_t, b1, gamma, beta, w2_t, b2 = torch_params
    h = x @ w1_t.T + b1
    mean = h.mean(-1, keepdims=True)
    var = ((h - mean) ** 2).mean(-1, keepdims=True)
    h = (h - mean) / jnp.sqrt(var + LN_EPS) * gamma + beta
    h = jnp.maximum(h, 0.0)
    cat = jnp.concatenate([h, x], axis=-1) if residual else h
    return cat @ w2_t.T + b2


if __name__ == "__main__":
    batch, seq = 2, 8
    input_dim, hidden_dim, output_dim = 32, 32, 32

    key = jax.random.PRNGKey(0)
    kx, kp1, kp2 = jax.random.split(key, 3)
    x = jax.random.normal(kx, (batch, seq, input_dim), jnp.float32)

    for residual, kp in ((True, kp1), (False, kp2)):
        torch_params = init_torch_params(kp, input_dim, hidden_dim,
                                         output_dim, residual)
        prepared = prepare_params(torch_params, input_dim, hidden_dim,
                                  output_dim, residual)
        out = linear_forward(x, prepared)
        out = jax.block_until_ready(out)
        ref = _reference(x, torch_params, residual)
        assert out.shape == (batch, seq, output_dim)
        # bf16 MXU operands (f32 accumulation) -> loosened tolerance vs f32 ref.
        max_err = float(jnp.max(jnp.abs(out - ref)))
        assert jnp.allclose(out, ref, atol=5e-2, rtol=5e-2), (
            f"mismatch (residual={residual}): max abs err {max_err}")

    print("KERNEL_OK")
</pallas_src>

<mosaic_0001>
module attributes {stable_mosaic.version = 11 : i64} {
  func.func @_linear_block_kernel(%arg0: i32, %arg1: memref<8x32xf32, #tpu.memory_space<vmem>>, %arg2: memref<32x128xbf16, #tpu.memory_space<vmem>>, %arg3: memref<1x128xf32, #tpu.memory_space<vmem>>, %arg4: memref<1x128xf32, #tpu.memory_space<vmem>>, %arg5: memref<1x128xf32, #tpu.memory_space<vmem>>, %arg6: memref<128x32xbf16, #tpu.memory_space<vmem>>, %arg7: memref<32x32xbf16, #tpu.memory_space<vmem>>, %arg8: memref<1x32xf32, #tpu.memory_space<vmem>>, %arg9: memref<8x32xf32, #tpu.memory_space<vmem>>) attributes {dimension_semantics = [#tpu.dimension_semantics<parallel>], iteration_bounds = array<i64: 2>, scalar_prefetch = 0 : i64, scratch_operands = 0 : i64, tpu.core_type = #tpu.core_type<tc>, window_params = [{transform_indices = @transform_0, window_bounds = array<i64: 8, 32>}, {pipeline_mode = #tpu.pipeline_mode<synchronous>, transform_indices = @transform_1, window_bounds = array<i64: 32, 128>}, {pipeline_mode = #tpu.pipeline_mode<synchronous>, transform_indices = @transform_2, window_bounds = array<i64: 1, 128>}, {pipeline_mode = #tpu.pipeline_mode<synchronous>, transform_indices = @transform_3, window_bounds = array<i64: 1, 128>}, {pipeline_mode = #tpu.pipeline_mode<synchronous>, transform_indices = @transform_4, window_bounds = array<i64: 1, 128>}, {pipeline_mode = #tpu.pipeline_mode<synchronous>, transform_indices = @transform_5, window_bounds = array<i64: 128, 32>}, {pipeline_mode = #tpu.pipeline_mode<synchronous>, transform_indices = @transform_6, window_bounds = array<i64: 32, 32>}, {pipeline_mode = #tpu.pipeline_mode<synchronous>, transform_indices = @transform_7, window_bounds = array<i64: 1, 32>}, {transform_indices = @transform_8, window_bounds = array<i64: 8, 32>}]} {
    %c0 = arith.constant 0 : index
    %c0_0 = arith.constant 0 : index
    %0 = vector.load %arg1[%c0, %c0_0] : memref<8x32xf32, #tpu.memory_space<vmem>>, vector<8x32xf32>
    %1 = arith.truncf %0 : vector<8x32xf32> to vector<8x32xbf16>
    %c0_1 = arith.constant 0 : index
    %c0_2 = arith.constant 0 : index
    %2 = vector.load %arg2[%c0_1, %c0_2] : memref<32x128xbf16, #tpu.memory_space<vmem>>, vector<32x128xbf16>
    %cst = arith.constant dense<0.000000e+00> : vector<8x128xf32>
    %3 = tpu.matmul %1, %2, %cst {dimension_numbers = #tpu.dot_dimension_numbers<[1], [0], [0], [1], [0, 0, 1, 1], [], []>} : vector<8x32xbf16>, vector<32x128xbf16>, vector<8x128xf32> -> vector<8x128xf32>
    %c0_3 = arith.constant 0 : index
    %c0_4 = arith.constant 0 : index
    %4 = vector.load %arg3[%c0_3, %c0_4] : memref<1x128xf32, #tpu.memory_space<vmem>>, vector<1x128xf32>
    %5 = vector.broadcast %4 : vector<1x128xf32> to vector<8x128xf32>
    %6 = arith.addf %3, %5 : vector<8x128xf32>
    %cst_5 = arith.constant dense<0.000000e+00> : vector<8xf32>
    %7 = vector.multi_reduction <add>, %6, %cst_5 [1] : vector<8x128xf32> to vector<8xf32>
    %8 = vector.shape_cast %7 : vector<8xf32> to vector<8x1xf32>
    %cst_6 = arith.constant 3.125000e-02 : f32
    %9 = vector.broadcast %cst_6 : f32 to vector<8x1xf32>
    %10 = arith.mulf %8, %9 : vector<8x1xf32>
    %11 = arith.mulf %6, %6 : vector<8x128xf32>
    %cst_7 = arith.constant dense<0.000000e+00> : vector<8xf32>
    %12 = vector.multi_reduction <add>, %11, %cst_7 [1] : vector<8x128xf32> to vector<8xf32>
    %13 = vector.shape_cast %12 : vector<8xf32> to vector<8x1xf32>
    %cst_8 = arith.constant 3.125000e-02 : f32
    %14 = vector.broadcast %cst_8 : f32 to vector<8x1xf32>
    %15 = arith.mulf %13, %14 : vector<8x1xf32>
    %16 = arith.mulf %10, %10 : vector<8x1xf32>
    %17 = arith.subf %15, %16 : vector<8x1xf32>
    %cst_9 = arith.constant 0.000000e+00 : f32
    %18 = vector.broadcast %cst_9 : f32 to vector<8x1xf32>
    %19 = arith.maximumf %17, %18 : vector<8x1xf32>
    %cst_10 = arith.constant 9.99999974E-6 : f32
    %20 = vector.broadcast %cst_10 : f32 to vector<8x1xf32>
    %21 = arith.addf %19, %20 : vector<8x1xf32>
    %22 = math.rsqrt %21 : vector<8x1xf32>
    %c0_11 = arith.constant 0 : index
    %c0_12 = arith.constant 0 : index
    %23 = vector.load %arg4[%c0_11, %c0_12] : memref<1x128xf32, #tpu.memory_space<vmem>>, vector<1x128xf32>
    %24 = vector.broadcast %23 : vector<1x128xf32> to vector<8x128xf32>
    %25 = vector.broadcast %22 : vector<8x1xf32> to vector<8x128xf32>
    %26 = arith.mulf %24, %25 : vector<8x128xf32>
    %c0_13 = arith.constant 0 : index
    %c0_14 = arith.constant 0 : index
    %27 = vector.load %arg5[%c0_13, %c0_14] : memref<1x128xf32, #tpu.memory_space<vmem>>, vector<1x128xf32>
    %28 = vector.broadcast %10 : vector<8x1xf32> to vector<8x128xf32>
    %29 = arith.mulf %28, %26 : vector<8x128xf32>
    %30 = vector.broadcast %27 : vector<1x128xf32> to vector<8x128xf32>
    %31 = arith.subf %30, %29 : vector<8x128xf32>
    %32 = arith.mulf %6, %26 : vector<8x128xf32>
    %33 = arith.addf %32, %31 : vector<8x128xf32>
    %cst_15 = arith.constant 0.000000e+00 : f32
    %34 = vector.broadcast %cst_15 : f32 to vector<8x128xf32>
    %35 = arith.maximumf %33, %34 : vector<8x128xf32>
    %36 = arith.truncf %35 : vector<8x128xf32> to vector<8x128xbf16>
    %c0_16 = arith.constant 0 : index
    %c0_17 = arith.constant 0 : index
    %37 = vector.load %arg6[%c0_16, %c0_17] : memref<128x32xbf16, #tpu.memory_space<vmem>>, vector<128x32xbf16>
    %cst_18 = arith.constant dense<0.000000e+00> : vector<8x32xf32>
    %38 = tpu.matmul %36, %37, %cst_18 {dimension_numbers = #tpu.dot_dimension_numbers<[1], [0], [0], [1], [0, 0, 1, 1], [], []>} : vector<8x128xbf16>, vector<128x32xbf16>, vector<8x32xf32> -> vector<8x32xf32>
    %c0_19 = arith.constant 0 : index
    %c0_20 = arith.constant 0 : index
    %39 = vector.load %arg8[%c0_19, %c0_20] : memref<1x32xf32, #tpu.memory_space<vmem>>, vector<1x32xf32>
    %40 = vector.broadcast %39 : vector<1x32xf32> to vector<8x32xf32>
    %41 = arith.addf %38, %40 : vector<8x32xf32>
    %c0_21 = arith.constant 0 : index
    %c0_22 = arith.constant 0 : index
    %42 = vector.load %arg7[%c0_21, %c0_22] : memref<32x32xbf16, #tpu.memory_space<vmem>>, vector<32x32xbf16>
    %cst_23 = arith.constant dense<0.000000e+00> : vector<8x32xf32>
    %43 = tpu.matmul %1, %42, %cst_23 {dimension_numbers = #tpu.dot_dimension_numbers<[1], [0], [0], [1], [0, 0, 1, 1], [], []>} : vector<8x32xbf16>, vector<32x32xbf16>, vector<8x32xf32> -> vector<8x32xf32>
    %44 = arith.addf %41, %43 : vector<8x32xf32>
    %c0_24 = arith.constant 0 : index
    %c0_25 = arith.constant 0 : index
    %45 = vector.load %arg9[%c0_24, %c0_25] : memref<8x32xf32, #tpu.memory_space<vmem>>, vector<8x32xf32>
    tpu.vector_store %arg9[%c0_24, %c0_25], %44 {strides = array<i32>} : memref<8x32xf32, #tpu.memory_space<vmem>>, vector<8x32xf32>,
    return
  }
  func.func @transform_0(%arg0: i32) -> (i32, i32) {
    %c0_i32 = arith.constant 0 : i32
    %c0_i32_0 = arith.constant 0 : i32
    return %arg0, %c0_i32 : i32, i32
  }
  func.func @transform_1(%arg0: i32) -> (i32, i32) {
    %c0_i32 = arith.constant 0 : i32
    %c0_i32_0 = arith.constant 0 : i32
    %c0_i32_1 = arith.constant 0 : i32
    return %c0_i32, %c0_i32_0 : i32, i32
  }
  func.func @transform_2(%arg0: i32) -> (i32, i32) {
    %c0_i32 = arith.constant 0 : i32
    %c0_i32_0 = arith.constant 0 : i32
    %c0_i32_1 = arith.constant 0 : i32
    return %c0_i32, %c0_i32_0 : i32, i32
  }
  func.func @transform_3(%arg0: i32) -> (i32, i32) {
    %c0_i32 = arith.constant 0 : i32
    %c0_i32_0 = arith.constant 0 : i32
    %c0_i32_1 = arith.constant 0 : i32
    return %c0_i32, %c0_i32_0 : i32, i32
  }
  func.func @transform_4(%arg0: i32) -> (i32, i32) {
    %c0_i32 = arith.constant 0 : i32
    %c0_i32_0 = arith.constant 0 : i32
    %c0_i32_1 = arith.constant 0 : i32
    return %c0_i32, %c0_i32_0 : i32, i32
  }
  func.func @transform_5(%arg0: i32) -> (i32, i32) {
    %c0_i32 = arith.constant 0 : i32
    %c0_i32_0 = arith.constant 0 : i32
    %c0_i32_1 = arith.constant 0 : i32
    return %c0_i32, %c0_i32_0 : i32, i32
  }
  func.func @transform_6(%arg0: i32) -> (i32, i32) {
    %c0_i32 = arith.constant 0 : i32
    %c0_i32_0 = arith.constant 0 : i32
    %c0_i32_1 = arith.constant 0 : i32
    return %c0_i32, %c0_i32_0 : i32, i32
  }
  func.func @transform_7(%arg0: i32) -> (i32, i32) {
    %c0_i32 = arith.constant 0 : i32
    %c0_i32_0 = arith.constant 0 : i32
    %c0_i32_1 = arith.constant 0 : i32
    return %c0_i32, %c0_i32_0 : i32, i32
  }
  func.func @transform_8(%arg0: i32) -> (i32, i32) {
    %c0_i32 = arith.constant 0 : i32
    %c0_i32_0 = arith.constant 0 : i32
    return %arg0, %c0_i32 : i32, i32
  }
}

module attributes {stable_mosaic.version = 11 : i64} {
  func.func @_linear_block_kernel(%arg0: i32, %arg1: memref<8x32xf32, #tpu.memory_space<vmem>>, %arg2: memref<32x128xbf16, #tpu.memory_space<vmem>>, %arg3: memref<1x128xf32, #tpu.memory_space<vmem>>, %arg4: memref<1x128xf32, #tpu.memory_space<vmem>>, %arg5: memref<1x128xf32, #tpu.memory_space<vmem>>, %arg6: memref<128x32xbf16, #tpu.memory_space<vmem>>, %arg7: memref<32x32xbf16, #tpu.memory_space<vmem>>, %arg8: memref<1x32xf32, #tpu.memory_space<vmem>>, %arg9: memref<8x32xf32, #tpu.memory_space<vmem>>) attributes {dimension_semantics = [#tpu.dimension_semantics<parallel>], iteration_bounds = array<i64: 2>, scalar_prefetch = 0 : i64, scratch_operands = 0 : i64, tpu.core_type = #tpu.core_type<tc>, window_params = [{transform_indices = @transform_0, window_bounds = array<i64: 8, 32>}, {pipeline_mode = #tpu.pipeline_mode<synchronous>, transform_indices = @transform_1, window_bounds = array<i64: 32, 128>}, {pipeline_mode = #tpu.pipeline_mode<synchronous>, transform_indices = @transform_2, window_bounds = array<i64: 1, 128>}, {pipeline_mode = #tpu.pipeline_mode<synchronous>, transform_indices = @transform_3, window_bounds = array<i64: 1, 128>}, {pipeline_mode = #tpu.pipeline_mode<synchronous>, transform_indices = @transform_4, window_bounds = array<i64: 1, 128>}, {pipeline_mode = #tpu.pipeline_mode<synchronous>, transform_indices = @transform_5, window_bounds = array<i64: 128, 32>}, {pipeline_mode = #tpu.pipeline_mode<synchronous>, transform_indices = @transform_6, window_bounds = array<i64: 32, 32>}, {pipeline_mode = #tpu.pipeline_mode<synchronous>, transform_indices = @transform_7, window_bounds = array<i64: 1, 32>}, {transform_indices = @transform_8, window_bounds = array<i64: 8, 32>}]} {
    %c0 = arith.constant 0 : index
    %c0_0 = arith.constant 0 : index
    %0 = vector.load %arg1[%c0, %c0_0] : memref<8x32xf32, #tpu.memory_space<vmem>>, vector<8x32xf32>
    %1 = arith.truncf %0 : vector<8x32xf32> to vector<8x32xbf16>
    %c0_1 = arith.constant 0 : index
    %c0_2 = arith.constant 0 : index
    %2 = vector.load %arg2[%c0_1, %c0_2] : memref<32x128xbf16, #tpu.memory_space<vmem>>, vector<32x128xbf16>
    %cst = arith.constant dense<0.000000e+00> : vector<8x128xf32>
    %3 = tpu.matmul %1, %2, %cst {dimension_numbers = #tpu.dot_dimension_numbers<[1], [0], [0], [1], [0, 0, 1, 1], [], []>} : vector<8x32xbf16>, vector<32x128xbf16>, vector<8x128xf32> -> vector<8x128xf32>
    %c0_3 = arith.constant 0 : index
    %c0_4 = arith.constant 0 : index
    %4 = vector.load %arg3[%c0_3, %c0_4] : memref<1x128xf32, #tpu.memory_space<vmem>>, vector<1x128xf32>
    %5 = vector.broadcast %4 : vector<1x128xf32> to vector<8x128xf32>
    %6 = arith.addf %3, %5 : vector<8x128xf32>
    %cst_5 = arith.constant dense<0.000000e+00> : vector<8xf32>
    %7 = vector.multi_reduction <add>, %6, %cst_5 [1] : vector<8x128xf32> to vector<8xf32>
    %8 = vector.shape_cast %7 : vector<8xf32> to vector<8x1xf32>
    %cst_6 = arith.constant 3.125000e-02 : f32
    %9 = vector.broadcast %cst_6 : f32 to vector<8x1xf32>
    %10 = arith.mulf %8, %9 : vector<8x1xf32>
    %11 = arith.mulf %6, %6 : vector<8x128xf32>
    %cst_7 = arith.constant dense<0.000000e+00> : vector<8xf32>
    %12 = vector.multi_reduction <add>, %11, %cst_7 [1] : vector<8x128xf32> to vector<8xf32>
    %13 = vector.shape_cast %12 : vector<8xf32> to vector<8x1xf32>
    %cst_8 = arith.constant 3.125000e-02 : f32
    %14 = vector.broadcast %cst_8 : f32 to vector<8x1xf32>
    %15 = arith.mulf %13, %14 : vector<8x1xf32>
    %16 = arith.mulf %10, %10 : vector<8x1xf32>
    %17 = arith.subf %15, %16 : vector<8x1xf32>
    %cst_9 = arith.constant 0.000000e+00 : f32
    %18 = vector.broadcast %cst_9 : f32 to vector<8x1xf32>
    %19 = arith.maximumf %17, %18 : vector<8x1xf32>
    %cst_10 = arith.constant 9.99999974E-6 : f32
    %20 = vector.broadcast %cst_10 : f32 to vector<8x1xf32>
    %21 = arith.addf %19, %20 : vector<8x1xf32>
    %22 = math.rsqrt %21 : vector<8x1xf32>
    %c0_11 = arith.constant 0 : index
    %c0_12 = arith.constant 0 : index
    %23 = vector.load %arg4[%c0_11, %c0_12] : memref<1x128xf32, #tpu.memory_space<vmem>>, vector<1x128xf32>
    %24 = vector.broadcast %23 : vector<1x128xf32> to vector<8x128xf32>
    %25 = vector.broadcast %22 : vector<8x1xf32> to vector<8x128xf32>
    %26 = arith.mulf %24, %25 : vector<8x128xf32>
    %c0_13 = arith.constant 0 : index
    %c0_14 = arith.constant 0 : index
    %27 = vector.load %arg5[%c0_13, %c0_14] : memref<1x128xf32, #tpu.memory_space<vmem>>, vector<1x128xf32>
    %28 = vector.broadcast %10 : vector<8x1xf32> to vector<8x128xf32>
    %29 = arith.mulf %28, %26 : vector<8x128xf32>
    %30 = vector.broadcast %27 : vector<1x128xf32> to vector<8x128xf32>
    %31 = arith.subf %30, %29 : vector<8x128xf32>
    %32 = arith.mulf %6, %26 : vector<8x128xf32>
    %33 = arith.addf %32, %31 : vector<8x128xf32>
    %cst_15 = arith.constant 0.000000e+00 : f32
    %34 = vector.broadcast %cst_15 : f32 to vector<8x128xf32>
    %35 = arith.maximumf %33, %34 : vector<8x128xf32>
    %36 = arith.truncf %35 : vector<8x128xf32> to vector<8x128xbf16>
    %c0_16 = arith.constant 0 : index
    %c0_17 = arith.constant 0 : index
    %37 = vector.load %arg6[%c0_16, %c0_17] : memref<128x32xbf16, #tpu.memory_space<vmem>>, vector<128x32xbf16>
    %cst_18 = arith.constant dense<0.000000e+00> : vector<8x32xf32>
    %38 = tpu.matmul %36, %37, %cst_18 {dimension_numbers = #tpu.dot_dimension_numbers<[1], [0], [0], [1], [0, 0, 1, 1], [], []>} : vector<8x128xbf16>, vector<128x32xbf16>, vector<8x32xf32> -> vector<8x32xf32>
    %c0_19 = arith.constant 0 : index
    %c0_20 = arith.constant 0 : index
    %39 = vector.load %arg8[%c0_19, %c0_20] : memref<1x32xf32, #tpu.memory_space<vmem>>, vector<1x32xf32>
    %40 = vector.broadcast %39 : vector<1x32xf32> to vector<8x32xf32>
    %41 = arith.addf %38, %40 : vector<8x32xf32>
    %c0_21 = arith.constant 0 : index
    %c0_22 = arith.constant 0 : index
    %42 = vector.load %arg7[%c0_21, %c0_22] : memref<32x32xbf16, #tpu.memory_space<vmem>>, vector<32x32xbf16>
    %cst_23 = arith.constant dense<0.000000e+00> : vector<8x32xf32>
    %43 = tpu.matmul %1, %42, %cst_23 {dimension_numbers = #tpu.dot_dimension_numbers<[1], [0], [0], [1], [0, 0, 1, 1], [], []>} : vector<8x32xbf16>, vector<32x32xbf16>, vector<8x32xf32> -> vector<8x32xf32>
    %44 = arith.addf %41, %43 : vector<8x32xf32>
    %c0_24 = arith.constant 0 : index
    %c0_25 = arith.constant 0 : index
    %45 = vector.load %arg9[%c0_24, %c0_25] : memref<8x32xf32, #tpu.memory_space<vmem>>, vector<8x32xf32>
    tpu.vector_store %arg9[%c0_24, %c0_25], %44 {strides = array<i32>} : memref<8x32xf32, #tpu.memory_space<vmem>>, vector<8x32xf32>,
    return
  }
  func.func @transform_0(%arg0: i32) -> (i32, i32) {
    %c0_i32 = arith.constant 0 : i32
    %c0_i32_0 = arith.constant 0 : i32
    return %arg0, %c0_i32 : i32, i32
  }
  func.func @transform_1(%arg0: i32) -> (i32, i32) {
    %c0_i32 = arith.constant 0 : i32
    %c0_i32_0 = arith.constant 0 : i32
    %c0_i32_1 = arith.constant 0 : i32
    return %c0_i32, %c0_i32_0 : i32, i32
  }
  func.func @transform_2(%arg0: i32) -> (i32, i32) {
    %c0_i32 = arith.constant 0 : i32
    %c0_i32_0 = arith.constant 0 : i32
    %c0_i32_1 = arith.constant 0 : i32
    return %c0_i32, %c0_i32_0 : i32, i32
  }
  func.func @transform_3(%arg0: i32) -> (i32, i32) {
    %c0_i32 = arith.constant 0 : i32
    %c0_i32_0 = arith.constant 0 : i32
    %c0_i32_1 = arith.constant 0 : i32
    return %c0_i32, %c0_i32_0 : i32, i32
  }
  func.func @transform_4(%arg0: i32) -> (i32, i32) {
    %c0_i32 = arith.constant 0 : i32
    %c0_i32_0 = arith.constant 0 : i32
    %c0_i32_1 = arith.constant 0 : i32
    return %c0_i32, %c0_i32_0 : i32, i32
  }
  func.func @transform_5(%arg0: i32) -> (i32, i32) {
    %c0_i32 = arith.constant 0 : i32
    %c0_i32_0 = arith.constant 0 : i32
    %c0_i32_1 = arith.constant 0 : i32
    return %c0_i32, %c0_i32_0 : i32, i32
  }
  func.func @transform_6(%arg0: i32) -> (i32, i32) {
    %c0_i32 = arith.constant 0 : i32
    %c0_i32_0 = arith.constant 0 : i32
    %c0_i32_1 = arith.constant 0 : i32
    return %c0_i32, %c0_i32_0 : i32, i32
  }
  func.func @transform_7(%arg0: i32) -> (i32, i32) {
    %c0_i32 = arith.constant 0 : i32
    %c0_i32_0 = arith.constant 0 : i32
    %c0_i32_1 = arith.constant 0 : i32
    return %c0_i32, %c0_i32_0 : i32, i32
  }
  func.func @transform_8(%arg0: i32) -> (i32, i32) {
    %c0_i32 = arith.constant 0 : i32
    %c0_i32_0 = arith.constant 0 : i32
    return %arg0, %c0_i32 : i32, i32
  }
}

</mosaic_0001>

<llo_original>
// kernel: tpu_custom_call.1
$region0: #{tpu_custom_call.1}
  #allocation0 [shape = 'u32[]', space=smem, size = 0x4, offset = 0x4, fixed_abs, tag = 'smem constant byte address 0x4 - core index']
  #allocation1 [shape = 'u32[144,128]{1,0:T(1,128)}', space=vmem, size = 0x12000, scoped, tag = 'internal scratch']
  %s0 = inlined_call_operand.vmem [shape: f32[16,32], index: 0, kind: input, shape index: {}]
  %s1 = inlined_call_operand.vmem [shape: bf16[32,128], index: 1, kind: input, shape index: {}]
  %s2 = inlined_call_operand.vmem [shape: f32[1,128], index: 2, kind: input, shape index: {}]
  %s3 = inlined_call_operand.vmem [shape: f32[1,128], index: 3, kind: input, shape index: {}]
  %s4 = inlined_call_operand.vmem [shape: f32[1,128], index: 4, kind: input, shape index: {}]
  %s5 = inlined_call_operand.vmem [shape: bf16[128,32], index: 5, kind: input, shape index: {}]
  %s6 = inlined_call_operand.vmem [shape: bf16[32,32], index: 6, kind: input, shape index: {}]
  %s7 = inlined_call_operand.vmem [shape: f32[1,32], index: 7, kind: input, shape index: {}]
  %s8 = inlined_call_operand.hbm [shape: f32[16,32], index: 8, kind: output, shape index: {}]
  %s9 = sld [smem:[#allocation0]]
  $region65: #{tpu_custom_call.1} parent=0
    _
  %s11 = ssub.s32 1, %s9
  %s12 = scalar_select 0, %s11, %s9
  $region1: #{tpu_custom_call.1} parent=0
    #allocation2 [shape = 'u8[8192]{0}', space=vmem, size = 0x2000, scoped, tag = 'output window, operand 0']
    #allocation3 [shape = 's32[2]{0}', space=sflag, size = 0x8, scoped, tag = 'scoped memory for tpu_custom_call.1']
    %13 = vsyncpa [#allocation3], 0
    %s14 = scalar_lea.sflag [#allocation3], 1
    %15 = vsyncpa %s14, 0
    loop: start=0, step=1, limit=4
    $region2: #{tpu_custom_call.1} parent=1 // loop_pre_header
      _
    $region3: #{tpu_custom_call.1} parent=1 // loop_header
      %s17 = sphi 0, %s21
      %p18 = scmp.ge.s32.totalorder %s17, 4
      %s27 = sphi 0, %s29
      %s30 = sphi 0, %s27
      %s31 = sphi 0, %s30
      %s47 = sphi 0, %s31
      %s51 = sphi 0, %s51
      %s53 = sphi 0, %s51
      %s54 = sphi 0, %s53
      %s68 = sphi 0, %s54
      %s72 = sphi 0, %s72
      %s74 = sphi 0, %s72
      %s75 = sphi 0, %s74
      %s89 = sphi 0, %s75
      %s93 = sphi 0, %s93
      %s95 = sphi 0, %s93
      %s96 = sphi 0, %s95
      %s110 = sphi 0, %s96
      %s114 = sphi 0, %s114
      %s116 = sphi 0, %s114
      %s117 = sphi 0, %s116
      %s131 = sphi 0, %s117
      %s135 = sphi 0, %s135
      %s137 = sphi 0, %s135
      %s138 = sphi 0, %s137
      %s152 = sphi 0, %s138
      %s156 = sphi 0, %s156
      %s158 = sphi 0, %s156
      %s159 = sphi 0, %s158
      %s173 = sphi 0, %s159
      %s177 = sphi 0, %s177
      %s179 = sphi 0, %s177
      %s180 = sphi 0, %s179
      %s194 = sphi 0, %s180
      %s200 = sphi 0, %s202
      %s203 = sphi 0, %s200
      %s204 = sphi 0, %s203
      %s220 = sphi 0, %s204
    $region4: #{tpu_custom_call.1} parent=1 // loop_header_branch
      %20 = sbr.rel (%p18) target = $region8
    $region5: #{tpu_custom_call.1} parent=1 // loop_body
      %s22 = ssub.s32 %s17, 1
      %s23 = ssub.s32 %s17, 2
      %s24 = sadd.s32 %s17, 1
      %s25 = ssub.s32 %s17, %s24
      %p26 = scmp.eq.s32.totalorder %s25, 0
      %s28 = sadd.s32 %s27, 1
      %s29 = scalar_select %p26, %s27, %s28
      %p32 = pneg %p26
      %p33 = scmp.eq.s32.totalorder %s17, 1
      %p34 = por %p32, %p33
      %p35 = scmp.ne.s32.totalorder %s27, %s30
      %p36 = scmp.eq.s32.totalorder %s17, 0
      %p37 = por %p35, %p36
      %p38 = scmp.ne.s32.totalorder %s27, %s30
      %p39 = scmp.eq.s32.totalorder %s22, 1
      %p40 = por %p38, %p39
      %p41 = scmp.ne.s32.totalorder %s30, %s31
      %p42 = scmp.eq.s32.totalorder %s22, 0
      %p43 = por %p41, %p42
      %p44 = scmp.ne.s32.totalorder %s30, %s31
      %p45 = scmp.eq.s32.totalorder %s23, 1
      %p46 = por %p44, %p45
      %p48 = scmp.ne.s32.totalorder %s31, %s47
      %p49 = scmp.eq.s32.totalorder %s23, 0
      %p50 = por %p48, %p49
      %s52 = sadd.s32 %s51, 1
      %p55 = scmp.eq.s32.totalorder %s17, 1
      %p56 = scmp.ne.s32.totalorder %s51, %s53
      %p57 = scmp.eq.s32.totalorder %s17, 0
      %p58 = por %p56, %p57
      %p59 = scmp.ne.s32.totalorder %s51, %s53
      %p60 = scmp.eq.s32.totalorder %s22, 1
      %p61 = por %p59, %p60
      %p62 = scmp.ne.s32.totalorder %s53, %s54
      %p63 = scmp.eq.s32.totalorder %s22, 0
      %p64 = por %p62, %p63
      %p65 = scmp.ne.s32.totalorder %s53, %s54
      %p66 = scmp.eq.s32.totalorder %s23, 1
      %p67 = por %p65, %p66
      %p69 = scmp.ne.s32.totalorder %s54, %s68
      %p70 = scmp.eq.s32.totalorder %s23, 0
      %p71 = por %p69, %p70
      %s73 = sadd.s32 %s72, 1
      %p76 = scmp.eq.s32.totalorder %s17, 1
      %p77 = scmp.ne.s32.totalorder %s72, %s74
      %p78 = scmp.eq.s32.totalorder %s17, 0
      %p79 = por %p77, %p78
      %p80 = scmp.ne.s32.totalorder %s72, %s74
      %p81 = scmp.eq.s32.totalorder %s22, 1
      %p82 = por %p80, %p81
      %p83 = scmp.ne.s32.totalorder %s74, %s75
      %p84 = scmp.eq.s32.totalorder %s22, 0
      %p85 = por %p83, %p84
      %p86 = scmp.ne.s32.totalorder %s74, %s75
      %p87 = scmp.eq.s32.totalorder %s23, 1
      %p88 = por %p86, %p87
      %p90 = scmp.ne.s32.totalorder %s75, %s89
      %p91 = scmp.eq.s32.totalorder %s23, 0
      %p92 = por %p90, %p91
      %s94 = sadd.s32 %s93, 1
      %p97 = scmp.eq.s32.totalorder %s17, 1
      %p98 = scmp.ne.s32.totalorder %s93, %s95
      %p99 = scmp.eq.s32.totalorder %s17, 0
      %p100 = por %p98, %p99
      %p101 = scmp.ne.s32.totalorder %s93, %s95
      %p102 = scmp.eq.s32.totalorder %s22, 1
      %p103 = por %p101, %p102
      %p104 = scmp.ne.s32.totalorder %s95, %s96
      %p105 = scmp.eq.s32.totalorder %s22, 0
      %p106 = por %p104, %p105
      %p107 = scmp.ne.s32.totalorder %s95, %s96
      %p108 = scmp.eq.s32.totalorder %s23, 1
      %p109 = por %p107, %p108
      %p111 = scmp.ne.s32.totalorder %s96, %s110
      %p112 = scmp.eq.s32.totalorder %s23, 0
      %p113 = por %p111, %p112
      %s115 = sadd.s32 %s114, 1
      %p118 = scmp.eq.s32.totalorder %s17, 1
      %p119 = scmp.ne.s32.totalorder %s114, %s116
      %p120 = scmp.eq.s32.totalorder %s17, 0
      %p121 = por %p119, %p120
      %p122 = scmp.ne.s32.totalorder %s114, %s116
      %p123 = scmp.eq.s32.totalorder %s22, 1
      %p124 = por %p122, %p123
      %p125 = scmp.ne.s32.totalorder %s116, %s117
      %p126 = scmp.eq.s32.totalorder %s22, 0
      %p127 = por %p125, %p126
      %p128 = scmp.ne.s32.totalorder %s116, %s117
      %p129 = scmp.eq.s32.totalorder %s23, 1
      %p130 = por %p128, %p129
      %p132 = scmp.ne.s32.totalorder %s117, %s131
      %p133 = scmp.eq.s32.totalorder %s23, 0
      %p134 = por %p132, %p133
      %s136 = sadd.s32 %s135, 1
      %p139 = scmp.eq.s32.totalorder %s17, 1
      %p140 = scmp.ne.s32.totalorder %s135, %s137
      %p141 = scmp.eq.s32.totalorder %s17, 0
      %p142 = por %p140, %p141
      %p143 = scmp.ne.s32.totalorder %s135, %s137
      %p144 = scmp.eq.s32.totalorder %s22, 1
      %p145 = por %p143, %p144
      %p146 = scmp.ne.s32.totalorder %s137, %s138
      %p147 = scmp.eq.s32.totalorder %s22, 0
      %p148 = por %p146, %p147
      %p149 = scmp.ne.s32.totalorder %s137, %s138
      %p150 = scmp.eq.s32.totalorder %s23, 1
      %p151 = por %p149, %p150
      %p153 = scmp.ne.s32.totalorder %s138, %s152
      %p154 = scmp.eq.s32.totalorder %s23, 0
      %p155 = por %p153, %p154
      %s157 = sadd.s32 %s156, 1
      %p160 = scmp.eq.s32.totalorder %s17, 1
      %p161 = scmp.ne.s32.totalorder %s156, %s158
      %p162 = scmp.eq.s32.totalorder %s17, 0
      %p163 = por %p161, %p162
      %p164 = scmp.ne.s32.totalorder %s156, %s158
      %p165 = scmp.eq.s32.totalorder %s22, 1
      %p166 = por %p164, %p165
      %p167 = scmp.ne.s32.totalorder %s158, %s159
      %p168 = scmp.eq.s32.totalorder %s22, 0
      %p169 = por %p167, %p168
      %p170 = scmp.ne.s32.totalorder %s158, %s159
      %p171 = scmp.eq.s32.totalorder %s23, 1
      %p172 = por %p170, %p171
      %p174 = scmp.ne.s32.totalorder %s159, %s173
      %p175 = scmp.eq.s32.totalorder %s23, 0
      %p176 = por %p174, %p175
      %s178 = sadd.s32 %s177, 1
      %p181 = scmp.eq.s32.totalorder %s17, 1
      %p182 = scmp.ne.s32.totalorder %s177, %s179
      %p183 = scmp.eq.s32.totalorder %s17, 0
      %p184 = por %p182, %p183
      %p185 = scmp.ne.s32.totalorder %s177, %s179
      %p186 = scmp.eq.s32.totalorder %s22, 1
      %p187 = por %p185, %p186
      %p188 = scmp.ne.s32.totalorder %s179, %s180
      %p189 = scmp.eq.s32.totalorder %s22, 0
      %p190 = por %p188, %p189
      %p191 = scmp.ne.s32.totalorder %s179, %s180
      %p192 = scmp.eq.s32.totalorder %s23, 1
      %p193 = por %p191, %p192
      %p195 = scmp.ne.s32.totalorder %s180, %s194
      %p196 = scmp.eq.s32.totalorder %s23, 0
      %p197 = por %p195, %p196
      %s198 = ssub.s32 %s17, %s24
      %p199 = scmp.eq.s32.totalorder %s198, 0
      %s201 = sadd.s32 %s200, 1
      %s202 = scalar_select %p199, %s200, %s201
      %p205 = pneg %p199
      %p206 = scmp.eq.s32.totalorder %s17, 1
      %p207 = por %p205, %p206
      %p208 = scmp.ne.s32.totalorder %s200, %s203
      %p209 = scmp.eq.s32.totalorder %s17, 0
      %p210 = por %p208, %p209
      %p211 = scmp.ne.s32.totalorder %s200, %s203
      %p212 = scmp.eq.s32.totalorder %s22, 1
      %p213 = por %p211, %p212
      %p214 = scmp.ne.s32.totalorder %s203, %s204
      %p215 = scmp.eq.s32.totalorder %s22, 0
      %p216 = por %p214, %p215
      %p217 = scmp.ne.s32.totalorder %s203, %s204
      %p218 = scmp.eq.s32.totalorder %s23, 1
      %p219 = por %p217, %p218
      %p221 = scmp.ne.s32.totalorder %s204, %s220
      %p222 = scmp.eq.s32.totalorder %s23, 0
      %p223 = por %p221, %p222
      %p224 = scmp.le.s32.totalorder 1, %s17
      %p225 = scmp.lt.s32.totalorder %s17, 3
      %p226 = pnand %p224, %p225
      %p227 = pneg %p226
      // Predicated region
      $region9: #{tpu_custom_call.1} parent=5 // pred_check
        _
      $region10: #{tpu_custom_call.1} parent=5 // pred_check_branch
        %229 = sbr.rel (%p226) target = $region12
      $region11: #{tpu_custom_call.1} parent=5 // pred_region
        %s230 = ssub.s32 %s17, 1
        // Predicated region
        $region13: #{tpu_custom_call.1} parent=11 // pred_check
          %p231 = pneg %p64
        $region14: #{tpu_custom_call.1} parent=11 // pred_check_branch
          %233 = sbr.rel (%p231) target = $region16
        $region15: #{tpu_custom_call.1} parent=11 // pred_region
          _
        $region16: #{tpu_custom_call.1} parent=11 // pred_fallthru
          _
        // Predicated region
        $region17: #{tpu_custom_call.1} parent=11 // pred_check
          %p234 = pneg %p85
        $region18: #{tpu_custom_call.1} parent=11 // pred_check_branch
          %236 = sbr.rel (%p234) target = $region20
        $region19: #{tpu_custom_call.1} parent=11 // pred_region
          _
        $region20: #{tpu_custom_call.1} parent=11 // pred_fallthru
          _
        // Predicated region
        $region21: #{tpu_custom_call.1} parent=11 // pred_check
          %p237 = pneg %p106
        $region22: #{tpu_custom_call.1} parent=11 // pred_check_branch
          %239 = sbr.rel (%p237) target = $region24
        $region23: #{tpu_custom_call.1} parent=11 // pred_region
          _
        $region24: #{tpu_custom_call.1} parent=11 // pred_fallthru
          _
        // Predicated region
        $region25: #{tpu_custom_call.1} parent=11 // pred_check
          %p240 = pneg %p127
        $region26: #{tpu_custom_call.1} parent=11 // pred_check_branch
          %242 = sbr.rel (%p240) target = $region28
        $region27: #{tpu_custom_call.1} parent=11 // pred_region
          _
        $region28: #{tpu_custom_call.1} parent=11 // pred_fallthru
          _
        // Predicated region
        $region29: #{tpu_custom_call.1} parent=11 // pred_check
          %p243 = pneg %p148
        $region30: #{tpu_custom_call.1} parent=11 // pred_check_branch
          %245 = sbr.rel (%p243) target = $region32
        $region31: #{tpu_custom_call.1} parent=11 // pred_region
          _
        $region32: #{tpu_custom_call.1} parent=11 // pred_fallthru
          _
        // Predicated region
        $region33: #{tpu_custom_call.1} parent=11 // pred_check
          %p246 = pneg %p169
        $region34: #{tpu_custom_call.1} parent=11 // pred_check_branch
          %248 = sbr.rel (%p246) target = $region36
        $region35: #{tpu_custom_call.1} parent=11 // pred_region
          _
        $region36: #{tpu_custom_call.1} parent=11 // pred_fallthru
          _
        // Predicated region
        $region37: #{tpu_custom_call.1} parent=11 // pred_check
          %p249 = pneg %p190
        $region38: #{tpu_custom_call.1} parent=11 // pred_check_branch
          %251 = sbr.rel (%p249) target = $region40
        $region39: #{tpu_custom_call.1} parent=11 // pred_region
          _
        $region40: #{tpu_custom_call.1} parent=11 // pred_fallthru
          _
      $region12: #{tpu_custom_call.1} parent=5 // pred_fallthru
        _
      %p252 = scmp.lt.s32.totalorder %s17, 2
      // Predicated region
      $region41: #{tpu_custom_call.1} parent=5 // pred_check
        %p253 = pneg %p252
      $region42: #{tpu_custom_call.1} parent=5 // pred_check_branch
        %255 = sbr.rel (%p253) target = $region44
      $region43: #{tpu_custom_call.1} parent=5 // pred_region
        // Predicated region
        $region45: #{tpu_custom_call.1} parent=43 // pred_check
          %p256 = pneg %p37
        $region46: #{tpu_custom_call.1} parent=43 // pred_check_branch
          %258 = sbr.rel (%p256) target = $region48
        $region47: #{tpu_custom_call.1} parent=43 // pred_region
          %p259 = scmp.lt.s32.totalorder %s17, 1
          %s260 = scalar_select %p259, %s17, 1
          %s261 = smul.addr %s260, 8
          %s262 = scalar_lea.vmem %s0, %s261
        $region48: #{tpu_custom_call.1} parent=43 // pred_fallthru
          _
      $region44: #{tpu_custom_call.1} parent=5 // pred_fallthru
        _
      %p263 = scmp.le.s32.totalorder 1, %s17
      %p264 = scmp.lt.s32.totalorder %s17, 3
      %p265 = pnand %p263, %p264
      %p266 = pneg %p265
      // Predicated region
      $region49: #{tpu_custom_call.1} parent=5 // pred_check
        _
      $region50: #{tpu_custom_call.1} parent=5 // pred_check_branch
        %268 = sbr.rel (%p265) target = $region52
      $region51: #{tpu_custom_call.1} parent=5 // pred_region
        %s269 = ssub.s32 %s17, 1
        %p270 = scmp.lt.s32.totalorder %s22, 1
        %s271 = scalar_select %p270, %s22, 1
        %s272 = smul.addr %s271, 8
        %s273 = scalar_lea.vmem %s0, %s272
        %p274 = pneg %p43
        %p275 = pneg %p40
        %p276 = pneg %p64
        %p277 = pneg %p61
        %p278 = pneg %p85
        %p279 = pneg %p82
        %p280 = pneg %p106
        %p281 = pneg %p103
        %p282 = pneg %p127
        %p283 = pneg %p124
        %p284 = pneg %p148
        %p285 = pneg %p145
        %p286 = pneg %p169
        %p287 = pneg %p166
        %p288 = pneg %p190
        %p289 = pneg %p187
        %p290 = pneg %p216
        %p291 = pneg %p213
        %s292 = sand.u32 %s203, 1
        %s293 = scalar_lea.sflag [#allocation3], %s292
        %s294 = sand.u32 %s203, 1
        %s295 = smul.addr %s294, 8
        %s296 = scalar_lea.vmem [#allocation2], %s295
        %p297 = scmp.lt.s32.totalorder %s22, 1
        %s298 = scalar_select %p297, %s22, 1
        %s299 = smul.addr %s298, 8
        %s300 = scalar_lea.vmem %s0, %s299
        %v302 = vld [vmem:[%s300] sm:$0xff]
        %v303 = vpack.c.bf16 %v302, %v302
        %v304 = vld [vmem:[%s1] sm:$0xf]
        %v305 = vld [vmem:[%s1 + $0x4] sm:$0xf]
        %v306 = vld [vmem:[%s1 + $0x8] sm:$0xf]
        %v307 = vld [vmem:[%s1 + $0xc] sm:$0xf]
        %v308 = vld [vmem:[%s2] sm:$0x1]
        %v310 = vlaneseq
        %v311 = vshrl.u32 %v310, 7
        %v312 = vsub.s32 0, %v311
        %v313 = vrot.slane %v308, %v312
        %v319 = vunpack.c.l.b16 %v304
        %v320 = vunpack.c.l.b16 %v305
        %v321 = vunpack.c.l.b16 %v306
        %v322 = vunpack.c.l.b16 %v307
        %v323 = vpack.c.b16 %v320, %v319
        %v324 = vpack.c.b16 %v322, %v321
        %vm327 = vcmask 261120
        %v329 = vsel %vm327, %v303, 0
        %331 = vmatprep.subr.bf16.mxu0 0
        %332 = vmatpush1.bf16.msra.mxu0 0
        %333 = vmatprep.subr.bf16.mxu0 0
        %334 = vmatpush1.bf16.msra.mxu0 0
        %335 = vmatprep.subr.bf16.mxu0 0
        %336 = vmatpush1.bf16.msra.mxu0 0
        %337 = vmatprep.subr.bf16.mxu0 0
        %338 = vmatpush1.bf16.msra.mxu0 0
        %339 = vmatprep.subr.bf16.mxu0 0
        %340 = vmatpush1.bf16.msra.mxu0 0
        %341 = vmatprep.subr.bf16.mxu0 0
        %342 = vmatpush1.bf16.msra.mxu0 0
        %343 = vmatprep.subr.bf16.mxu0 0
        %344 = vmatpush1.bf16.msra.mxu0 %v324
        %345 = vmatprep.subr.bf16.mxu0 0
        %346 = vmatpush1.bf16.msra.mxu0 %v323
        %347 = vmatprep.subr.bf16.mxu0 0
        %348 = vmatpush2.bf16.msra.mxu0 0
        %349 = vmatprep.subr.bf16.mxu0 0
        %350 = vmatpush2.bf16.msra.mxu0 0
        %351 = vmatprep.subr.bf16.mxu0 0
        %352 = vmatpush2.bf16.msra.mxu0 0
        %353 = vmatprep.subr.bf16.mxu0 0
        %354 = vmatpush2.bf16.msra.mxu0 0
        %355 = vmatprep.subr.bf16.mxu0 0
        %356 = vmatpush2.bf16.msra.mxu0 0
        %357 = vmatprep.subr.bf16.mxu0 0
        %358 = vmatpush2.bf16.msra.mxu0 0
        %359 = vmatprep.subr.bf16.mxu0 0
        %360 = vmatpush2.bf16.msra.mxu0 0
        %361 = vmatprep.subr.bf16.mxu0 0
        %362 = vmatpush2.bf16.msra.mxu0 0
        %363 = vmatprep.mubr.bf16.mxu0 0
        %364 = vmatmul.mubr.bf16.gmra.mxu0 %v329
        %v365 = vpop.f32.mrf.mxu0
        %v366 = vadd.f32 %v313, %v365
        %v367 = vpop.f32.mrf.mxu0
        %v368 = vpop.f32.mrf.mxu0
        %v369 = vpop.f32.mrf.mxu0
        %370 = vdwg.mxu0
        %371 = vadd.xlane.f32.xlu0 %v366
        %v372 = vpop.xlane.xlu0 %371
        %v373 = vmul.f32 %v372, 0.03125
        %v374 = vmul.f32 %v366, %v366
        %375 = vadd.xlane.f32.xlu0 %v374
        %v376 = vpop.xlane.xlu0 %375
        %v377 = vmul.f32 %v376, 0.03125
        %v378 = vmul.f32 %v373, %v373
        %v379 = vsub.f32 %v377, %v378
        %v380 = vmax.f32 %v379, 0.0
        %v381 = vadd.f32 %v380, 1e-05
        %v382 = vrsqrt.pop %v381
        %v383 = vld [vmem:[%s3] sm:$0x1]
        %v385 = vlaneseq
        %v386 = vshrl.u32 %v385, 7
        %v387 = vsub.s32 0, %v386
        %v388 = vrot.slane %v383, %v387
        %v390 = vmul.f32 %v388, %v382
        %v391 = vld [vmem:[%s4] sm:$0x1]
        %v392 = vmul.f32 %v373, %v390
        %v394 = vlaneseq
        %v395 = vshrl.u32 %v394, 7
        %v396 = vsub.s32 0, %v395
        %v397 = vrot.slane %v391, %v396
        %v399 = vsub.f32 %v397, %v392
        %v400 = vmul.f32 %v366, %v390
        %v401 = vadd.f32 %v400, %v399
        %v402 = vmax.f32 %v401, 0.0
        %v403 = vpack.c.bf16 %v402, %v402
        %v404 = vld [vmem:[%s5] sm:$0xf]
        %v405 = vld [vmem:[%s5 + $0x4] sm:$0xf]
        %v406 = vld [vmem:[%s5 + $0x8] sm:$0xf]
        %v407 = vld [vmem:[%s5 + $0xc] sm:$0xf]
        %v408 = vld [vmem:[%s5 + $0x10] sm:$0xf]
        %v409 = vld [vmem:[%s5 + $0x14] sm:$0xf]
        %v410 = vld [vmem:[%s5 + $0x18] sm:$0xf]
        %v411 = vld [vmem:[%s5 + $0x1c] sm:$0xf]
        %v412 = vld [vmem:[%s5 + $0x20] sm:$0xf]
        %v413 = vld [vmem:[%s5 + $0x24] sm:$0xf]
        %v414 = vld [vmem:[%s5 + $0x28] sm:$0xf]
        %v415 = vld [vmem:[%s5 + $0x2c] sm:$0xf]
        %v416 = vld [vmem:[%s5 + $0x30] sm:$0xf]
        %v417 = vld [vmem:[%s5 + $0x34] sm:$0xf]
        %v418 = vld [vmem:[%s5 + $0x38] sm:$0xf]
        %v419 = vld [vmem:[%s5 + $0x3c] sm:$0xf]
        %v420 = vld [vmem:[%s7] sm:$0x1]
        %v422 = vlaneseq
        %v423 = vshrl.u32 %v422, 7
        %v424 = vsub.s32 0, %v423
        %v425 = vrot.slane %v420, %v424
        %v443 = vunpack.c.l.b16 %v404
        %v444 = vunpack.c.l.b16 %v405
        %v445 = vunpack.c.l.b16 %v406
        %v446 = vunpack.c.l.b16 %v407
        %v447 = vunpack.c.l.b16 %v408
        %v448 = vunpack.c.l.b16 %v409
        %v449 = vunpack.c.l.b16 %v410
        %v450 = vunpack.c.l.b16 %v411
        %v451 = vunpack.c.l.b16 %v412
        %v452 = vunpack.c.l.b16 %v413
        %v453 = vunpack.c.l.b16 %v414
        %v454 = vunpack.c.l.b16 %v415
        %v455 = vunpack.c.l.b16 %v416
        %v456 = vunpack.c.l.b16 %v417
        %v457 = vunpack.c.l.b16 %v418
        %v458 = vunpack.c.l.b16 %v419
        %v459 = vpack.c.b16 %v444, %v443
        %v460 = vpack.c.b16 %v446, %v445
        %v461 = vpack.c.b16 %v448, %v447
        %v462 = vpack.c.b16 %v450, %v449
        %v463 = vpack.c.b16 %v452, %v451
        %v464 = vpack.c.b16 %v454, %v453
        %v465 = vpack.c.b16 %v456, %v455
        %v466 = vpack.c.b16 %v458, %v457
        %475 = vmatprep.subr.bf16.mxu0 0
        %476 = vmatpush1.bf16.msra.mxu0 %v466
        %477 = vmatprep.subr.bf16.mxu0 0
        %478 = vmatpush1.bf16.msra.mxu0 %v465
        %479 = vmatprep.subr.bf16.mxu0 0
        %480 = vmatpush1.bf16.msra.mxu0 %v464
        %481 = vmatprep.subr.bf16.mxu0 0
        %482 = vmatpush1.bf16.msra.mxu0 %v463
        %483 = vmatprep.subr.bf16.mxu0 0
        %484 = vmatpush1.bf16.msra.mxu0 %v462
        %485 = vmatprep.subr.bf16.mxu0 0
        %486 = vmatpush1.bf16.msra.mxu0 %v461
        %487 = vmatprep.subr.bf16.mxu0 0
        %488 = vmatpush1.bf16.msra.mxu0 %v460
        %489 = vmatprep.subr.bf16.mxu0 0
        %490 = vmatpush1.bf16.msra.mxu0 %v459
        %491 = vmatprep.subr.bf16.mxu0 0
        %492 = vmatpush2.bf16.msra.mxu0 0
        %493 = vmatprep.subr.bf16.mxu0 0
        %494 = vmatpush2.bf16.msra.mxu0 0
        %495 = vmatprep.subr.bf16.mxu0 0
        %496 = vmatpush2.bf16.msra.mxu0 0
        %497 = vmatprep.subr.bf16.mxu0 0
        %498 = vmatpush2.bf16.msra.mxu0 0
        %499 = vmatprep.subr.bf16.mxu0 0
        %500 = vmatpush2.bf16.msra.mxu0 0
        %501 = vmatprep.subr.bf16.mxu0 0
        %502 = vmatpush2.bf16.msra.mxu0 0
        %503 = vmatprep.subr.bf16.mxu0 0
        %504 = vmatpush2.bf16.msra.mxu0 0
        %505 = vmatprep.subr.bf16.mxu0 0
        %506 = vmatpush2.bf16.msra.mxu0 0
        %507 = vmatprep.mubr.bf16.mxu0 0
        %508 = vmatmul.mubr.bf16.gmra.mxu0 %v403
        %v509 = vpop.f32.mrf.mxu0
        %v510 = vadd.f32 %v425, %v509
        %v511 = vpop.f32.mrf.mxu0
        %v512 = vpop.f32.mrf.mxu0
        %v513 = vpop.f32.mrf.mxu0
        %514 = vdwg.mxu0
        %v515 = vld [vmem:[%s6] sm:$0xf]
        %v516 = vld [vmem:[%s6 + $0x4] sm:$0xf]
        %v517 = vld [vmem:[%s6 + $0x8] sm:$0xf]
        %v518 = vld [vmem:[%s6 + $0xc] sm:$0xf]
        %v523 = vunpack.c.l.b16 %v515
        %v524 = vunpack.c.l.b16 %v516
        %v525 = vunpack.c.l.b16 %v517
        %v526 = vunpack.c.l.b16 %v518
        %v527 = vpack.c.b16 %v524, %v523
        %v528 = vpack.c.b16 %v526, %v525
        %531 = vmatprep.subr.bf16.mxu0 0
        %532 = vmatpush1.bf16.msra.mxu0 0
        %533 = vmatprep.subr.bf16.mxu0 0
        %534 = vmatpush1.bf16.msra.mxu0 0
        %535 = vmatprep.subr.bf16.mxu0 0
        %536 = vmatpush1.bf16.msra.mxu0 0
        %537 = vmatprep.subr.bf16.mxu0 0
        %538 = vmatpush1.bf16.msra.mxu0 0
        %539 = vmatprep.subr.bf16.mxu0 0
        %540 = vmatpush1.bf16.msra.mxu0 0
        %541 = vmatprep.subr.bf16.mxu0 0
        %542 = vmatpush1.bf16.msra.mxu0 0
        %543 = vmatprep.subr.bf16.mxu0 0
        %544 = vmatpush1.bf16.msra.mxu0 %v528
        %545 = vmatprep.subr.bf16.mxu0 0
        %546 = vmatpush1.bf16.msra.mxu0 %v527
        %547 = vmatprep.subr.bf16.mxu0 0
        %548 = vmatpush2.bf16.msra.mxu0 0
        %549 = vmatprep.subr.bf16.mxu0 0
        %550 = vmatpush2.bf16.msra.mxu0 0
        %551 = vmatprep.subr.bf16.mxu0 0
        %552 = vmatpush2.bf16.msra.mxu0 0
        %553 = vmatprep.subr.bf16.mxu0 0
        %554 = vmatpush2.bf16.msra.mxu0 0
        %555 = vmatprep.subr.bf16.mxu0 0
        %556 = vmatpush2.bf16.msra.mxu0 0
        %557 = vmatprep.subr.bf16.mxu0 0
        %558 = vmatpush2.bf16.msra.mxu0 0
        %559 = vmatprep.subr.bf16.mxu0 0
        %560 = vmatpush2.bf16.msra.mxu0 0
        %561 = vmatprep.subr.bf16.mxu0 0
        %562 = vmatpush2.bf16.msra.mxu0 0
        %563 = vmatprep.mubr.bf16.mxu0 0
        %564 = vmatmul.mubr.bf16.gmra.mxu0 %v329
        %v565 = vpop.f32.mrf.mxu0
        %v566 = vadd.f32 0.0, %v565
        %v567 = vpop.f32.mrf.mxu0
        %v568 = vpop.f32.mrf.mxu0
        %v569 = vpop.f32.mrf.mxu0
        %570 = vdwg.mxu0
        %v571 = vadd.f32 %v510, %v566
        %572 = vst.msk [vmem:[%s296] sm:$0xff] %vm327, %v571
        %s573 = sand.u32 %s203, 1
        %s574 = scalar_lea.sflag [#allocation3], %s573
        %s575 = sand.u32 %s203, 1
        %s576 = smul.addr %s575, 8
        %s577 = scalar_lea.vmem [#allocation2], %s576
        // Predicated region
        $region53: #{tpu_custom_call.1} parent=51 // pred_check
          %p578 = pneg %p213
        $region54: #{tpu_custom_call.1} parent=51 // pred_check_branch
          %580 = sbr.rel (%p578) target = $region56
        $region55: #{tpu_custom_call.1} parent=51 // pred_region
          %s582 = ssub.s32 128, 128
          %583 = vsyncadd %s574, %s582
          %s584 = smul.addr %s22, 128
          %s585 = scalar_lea.hbm %s8, %s584
          %s587 = sshll.u32 %s577, 4
          %s588 = int_to_ptr.vmem [resolvable:$true] %s587
          %590 = dma.vmem_to_hbm [thread:$0]  %s588, 128, %s585, %s574
        $region56: #{tpu_custom_call.1} parent=51 // pred_fallthru
          _
      $region52: #{tpu_custom_call.1} parent=5 // pred_fallthru
        _
      %p591 = scmp.le.s32.totalorder 2, %s17
      // Predicated region
      $region57: #{tpu_custom_call.1} parent=5 // pred_check
        %p592 = pneg %p591
      $region58: #{tpu_custom_call.1} parent=5 // pred_check_branch
        %594 = sbr.rel (%p592) target = $region60
      $region59: #{tpu_custom_call.1} parent=5 // pred_region
        %s595 = ssub.s32 %s17, 2
        // Predicated region
        $region61: #{tpu_custom_call.1} parent=59 // pred_check
          %p596 = pneg %p219
        $region62: #{tpu_custom_call.1} parent=59 // pred_check_branch
          %598 = sbr.rel (%p596) target = $region64
        $region63: #{tpu_custom_call.1} parent=59 // pred_region
          %s599 = sand.u32 %s204, 1
          %s600 = scalar_lea.sflag [#allocation3], %s599
          %s601 = sand.u32 %s204, 1
          %s602 = smul.addr %s601, 8
          %s603 = scalar_lea.vmem [#allocation2], %s602
          %604 = dma.done %s600, 128
        $region64: #{tpu_custom_call.1} parent=59 // pred_fallthru
          _
      $region60: #{tpu_custom_call.1} parent=5 // pred_fallthru
        _
    $region6: #{tpu_custom_call.1} parent=1 // loop_footer
      %s21 = sadd.s32 1, %s17
    $region7: #{tpu_custom_call.1} parent=1 // loop_footer_branch
      %16 = sbr.rel target = $region3
    $region8: #{tpu_custom_call.1} parent=1 // loop_exit
      _
    %605 = vsyncpa [#allocation3], 1
    %s606 = scalar_lea.sflag [#allocation3], 1
    %607 = vsyncpa %s606, 1

// kernel: tpu_custom_call.1
$region0: #{tpu_custom_call.1}
  #allocation0 [shape = 'u32[]', space=smem, size = 0x4, offset = 0x4, fixed_abs, tag = 'smem constant byte address 0x4 - core index']
  #allocation1 [shape = 'u32[144,128]{1,0:T(1,128)}', space=vmem, size = 0x12000, scoped, tag = 'internal scratch']
  %s0 = inlined_call_operand.vmem [shape: f32[16,32], index: 0, kind: input, shape index: {}]
  %s1 = inlined_call_operand.vmem [shape: bf16[32,128], index: 1, kind: input, shape index: {}]
  %s2 = inlined_call_operand.vmem [shape: f32[1,128], index: 2, kind: input, shape index: {}]
  %s3 = inlined_call_operand.vmem [shape: f32[1,128], index: 3, kind: input, shape index: {}]
  %s4 = inlined_call_operand.vmem [shape: f32[1,128], index: 4, kind: input, shape index: {}]
  %s5 = inlined_call_operand.vmem [shape: bf16[128,32], index: 5, kind: input, shape index: {}]
  %s6 = inlined_call_operand.vmem [shape: bf16[32,32], index: 6, kind: input, shape index: {}]
  %s7 = inlined_call_operand.vmem [shape: f32[1,32], index: 7, kind: input, shape index: {}]
  %s8 = inlined_call_operand.hbm [shape: f32[16,32], index: 8, kind: output, shape index: {}]
  %s9 = sld [smem:[#allocation0]]
  $region65: #{tpu_custom_call.1} parent=0
    _
  %s11 = ssub.s32 1, %s9
  %s12 = scalar_select 0, %s11, %s9
  $region1: #{tpu_custom_call.1} parent=0
    #allocation2 [shape = 'u8[8192]{0}', space=vmem, size = 0x2000, scoped, tag = 'output window, operand 0']
    #allocation3 [shape = 's32[2]{0}', space=sflag, size = 0x8, scoped, tag = 'scoped memory for tpu_custom_call.1']
    %13 = vsyncpa [#allocation3], 0
    %s14 = scalar_lea.sflag [#allocation3], 1
    %15 = vsyncpa %s14, 0
    loop: start=0, step=1, limit=4
    $region2: #{tpu_custom_call.1} parent=1 // loop_pre_header
      _
    $region3: #{tpu_custom_call.1} parent=1 // loop_header
      %s17 = sphi 0, %s21
      %p18 = scmp.ge.s32.totalorder %s17, 4
      %s27 = sphi 0, %s29
      %s30 = sphi 0, %s27
      %s31 = sphi 0, %s30
      %s47 = sphi 0, %s31
      %s51 = sphi 0, %s51
      %s53 = sphi 0, %s51
      %s54 = sphi 0, %s53
      %s68 = sphi 0, %s54
      %s72 = sphi 0, %s72
      %s74 = sphi 0, %s72
      %s75 = sphi 0, %s74
      %s89 = sphi 0, %s75
      %s93 = sphi 0, %s93
      %s95 = sphi 0, %s93
      %s96 = sphi 0, %s95
      %s110 = sphi 0, %s96
      %s114 = sphi 0, %s114
      %s116 = sphi 0, %s114
      %s117 = sphi 0, %s116
      %s131 = sphi 0, %s117
      %s135 = sphi 0, %s135
      %s137 = sphi 0, %s135
      %s138 = sphi 0, %s137
      %s152 = sphi 0, %s138
      %s156 = sphi 0, %s156
      %s158 = sphi 0, %s156
      %s159 = sphi 0, %s158
      %s173 = sphi 0, %s159
      %s177 = sphi 0, %s177
      %s179 = sphi 0, %s177
      %s180 = sphi 0, %s179
      %s194 = sphi 0, %s180
      %s200 = sphi 0, %s202
      %s203 = sphi 0, %s200
      %s204 = sphi 0, %s203
      %s220 = sphi 0, %s204
    $region4: #{tpu_custom_call.1} parent=1 // loop_header_branch
      %20 = sbr.rel (%p18) target = $region8
    $region5: #{tpu_custom_call.1} parent=1 // loop_body
      %s22 = ssub.s32 %s17, 1
      %s23 = ssub.s32 %s17, 2
      %s24 = sadd.s32 %s17, 1
      %s25 = ssub.s32 %s17, %s24
      %p26 = scmp.eq.s32.totalorder %s25, 0
      %s28 = sadd.s32 %s27, 1
      %s29 = scalar_select %p26, %s27, %s28
      %p32 = pneg %p26
      %p33 = scmp.eq.s32.totalorder %s17, 1
      %p34 = por %p32, %p33
      %p35 = scmp.ne.s32.totalorder %s27, %s30
      %p36 = scmp.eq.s32.totalorder %s17, 0
      %p37 = por %p35, %p36
      %p38 = scmp.ne.s32.totalorder %s27, %s30
      %p39 = scmp.eq.s32.totalorder %s22, 1
      %p40 = por %p38, %p39
      %p41 = scmp.ne.s32.totalorder %s30, %s31
      %p42 = scmp.eq.s32.totalorder %s22, 0
      %p43 = por %p41, %p42
      %p44 = scmp.ne.s32.totalorder %s30, %s31
      %p45 = scmp.eq.s32.totalorder %s23, 1
      %p46 = por %p44, %p45
      %p48 = scmp.ne.s32.totalorder %s31, %s47
      %p49 = scmp.eq.s32.totalorder %s23, 0
      %p50 = por %p48, %p49
      %s52 = sadd.s32 %s51, 1
      %p55 = scmp.eq.s32.totalorder %s17, 1
      %p56 = scmp.ne.s32.totalorder %s51, %s53
      %p57 = scmp.eq.s32.totalorder %s17, 0
      %p58 = por %p56, %p57
      %p59 = scmp.ne.s32.totalorder %s51, %s53
      %p60 = scmp.eq.s32.totalorder %s22, 1
      %p61 = por %p59, %p60
      %p62 = scmp.ne.s32.totalorder %s53, %s54
      %p63 = scmp.eq.s32.totalorder %s22, 0
      %p64 = por %p62, %p63
      %p65 = scmp.ne.s32.totalorder %s53, %s54
      %p66 = scmp.eq.s32.totalorder %s23, 1
      %p67 = por %p65, %p66
      %p69 = scmp.ne.s32.totalorder %s54, %s68
      %p70 = scmp.eq.s32.totalorder %s23, 0
      %p71 = por %p69, %p70
      %s73 = sadd.s32 %s72, 1
      %p76 = scmp.eq.s32.totalorder %s17, 1
      %p77 = scmp.ne.s32.totalorder %s72, %s74
      %p78 = scmp.eq.s32.totalorder %s17, 0
      %p79 = por %p77, %p78
      %p80 = scmp.ne.s32.totalorder %s72, %s74
      %p81 = scmp.eq.s32.totalorder %s22, 1
      %p82 = por %p80, %p81
      %p83 = scmp.ne.s32.totalorder %s74, %s75
      %p84 = scmp.eq.s32.totalorder %s22, 0
      %p85 = por %p83, %p84
      %p86 = scmp.ne.s32.totalorder %s74, %s75
      %p87 = scmp.eq.s32.totalorder %s23, 1
      %p88 = por %p86, %p87
      %p90 = scmp.ne.s32.totalorder %s75, %s89
      %p91 = scmp.eq.s32.totalorder %s23, 0
      %p92 = por %p90, %p91
      %s94 = sadd.s32 %s93, 1
      %p97 = scmp.eq.s32.totalorder %s17, 1
      %p98 = scmp.ne.s32.totalorder %s93, %s95
      %p99 = scmp.eq.s32.totalorder %s17, 0
      %p100 = por %p98, %p99
      %p101 = scmp.ne.s32.totalorder %s93, %s95
      %p102 = scmp.eq.s32.totalorder %s22, 1
      %p103 = por %p101, %p102
      %p104 = scmp.ne.s32.totalorder %s95, %s96
      %p105 = scmp.eq.s32.totalorder %s22, 0
      %p106 = por %p104, %p105
      %p107 = scmp.ne.s32.totalorder %s95, %s96
      %p108 = scmp.eq.s32.totalorder %s23, 1
      %p109 = por %p107, %p108
      %p111 = scmp.ne.s32.totalorder %s96, %s110
      %p112 = scmp.eq.s32.totalorder %s23, 0
      %p113 = por %p111, %p112
      %s115 = sadd.s32 %s114, 1
      %p118 = scmp.eq.s32.totalorder %s17, 1
      %p119 = scmp.ne.s32.totalorder %s114, %s116
      %p120 = scmp.eq.s32.totalorder %s17, 0
      %p121 = por %p119, %p120
      %p122 = scmp.ne.s32.totalorder %s114, %s116
      %p123 = scmp.eq.s32.totalorder %s22, 1
      %p124 = por %p122, %p123
      %p125 = scmp.ne.s32.totalorder %s116, %s117
      %p126 = scmp.eq.s32.totalorder %s22, 0
      %p127 = por %p125, %p126
      %p128 = scmp.ne.s32.totalorder %s116, %s117
      %p129 = scmp.eq.s32.totalorder %s23, 1
      %p130 = por %p128, %p129
      %p132 = scmp.ne.s32.totalorder %s117, %s131
      %p133 = scmp.eq.s32.totalorder %s23, 0
      %p134 = por %p132, %p133
      %s136 = sadd.s32 %s135, 1
      %p139 = scmp.eq.s32.totalorder %s17, 1
      %p140 = scmp.ne.s32.totalorder %s135, %s137
      %p141 = scmp.eq.s32.totalorder %s17, 0
      %p142 = por %p140, %p141
      %p143 = scmp.ne.s32.totalorder %s135, %s137
      %p144 = scmp.eq.s32.totalorder %s22, 1
      %p145 = por %p143, %p144
      %p146 = scmp.ne.s32.totalorder %s137, %s138
      %p147 = scmp.eq.s32.totalorder %s22, 0
      %p148 = por %p146, %p147
      %p149 = scmp.ne.s32.totalorder %s137, %s138
      %p150 = scmp.eq.s32.totalorder %s23, 1
      %p151 = por %p149, %p150
      %p153 = scmp.ne.s32.totalorder %s138, %s152
      %p154 = scmp.eq.s32.totalorder %s23, 0
      %p155 = por %p153, %p154
      %s157 = sadd.s32 %s156, 1
      %p160 = scmp.eq.s32.totalorder %s17, 1
      %p161 = scmp.ne.s32.totalorder %s156, %s158
      %p162 = scmp.eq.s32.totalorder %s17, 0
      %p163 = por %p161, %p162
      %p164 = scmp.ne.s32.totalorder %s156, %s158
      %p165 = scmp.eq.s32.totalorder %s22, 1
      %p166 = por %p164, %p165
      %p167 = scmp.ne.s32.totalorder %s158, %s159
      %p168 = scmp.eq.s32.totalorder %s22, 0
      %p169 = por %p167, %p168
      %p170 = scmp.ne.s32.totalorder %s158, %s159
      %p171 = scmp.eq.s32.totalorder %s23, 1
      %p172 = por %p170, %p171
      %p174 = scmp.ne.s32.totalorder %s159, %s173
      %p175 = scmp.eq.s32.totalorder %s23, 0
      %p176 = por %p174, %p175
      %s178 = sadd.s32 %s177, 1
      %p181 = scmp.eq.s32.totalorder %s17, 1
      %p182 = scmp.ne.s32.totalorder %s177, %s179
      %p183 = scmp.eq.s32.totalorder %s17, 0
      %p184 = por %p182, %p183
      %p185 = scmp.ne.s32.totalorder %s177, %s179
      %p186 = scmp.eq.s32.totalorder %s22, 1
      %p187 = por %p185, %p186
      %p188 = scmp.ne.s32.totalorder %s179, %s180
      %p189 = scmp.eq.s32.totalorder %s22, 0
      %p190 = por %p188, %p189
      %p191 = scmp.ne.s32.totalorder %s179, %s180
      %p192 = scmp.eq.s32.totalorder %s23, 1
      %p193 = por %p191, %p192
      %p195 = scmp.ne.s32.totalorder %s180, %s194
      %p196 = scmp.eq.s32.totalorder %s23, 0
      %p197 = por %p195, %p196
      %s198 = ssub.s32 %s17, %s24
      %p199 = scmp.eq.s32.totalorder %s198, 0
      %s201 = sadd.s32 %s200, 1
      %s202 = scalar_select %p199, %s200, %s201
      %p205 = pneg %p199
      %p206 = scmp.eq.s32.totalorder %s17, 1
      %p207 = por %p205, %p206
      %p208 = scmp.ne.s32.totalorder %s200, %s203
      %p209 = scmp.eq.s32.totalorder %s17, 0
      %p210 = por %p208, %p209
      %p211 = scmp.ne.s32.totalorder %s200, %s203
      %p212 = scmp.eq.s32.totalorder %s22, 1
      %p213 = por %p211, %p212
      %p214 = scmp.ne.s32.totalorder %s203, %s204
      %p215 = scmp.eq.s32.totalorder %s22, 0
      %p216 = por %p214, %p215
      %p217 = scmp.ne.s32.totalorder %s203, %s204
      %p218 = scmp.eq.s32.totalorder %s23, 1
      %p219 = por %p217, %p218
      %p221 = scmp.ne.s32.totalorder %s204, %s220
      %p222 = scmp.eq.s32.totalorder %s23, 0
      %p223 = por %p221, %p222
      %p224 = scmp.le.s32.totalorder 1, %s17
      %p225 = scmp.lt.s32.totalorder %s17, 3
      %p226 = pnand %p224, %p225
      %p227 = pneg %p226
      // Predicated region
      $region9: #{tpu_custom_call.1} parent=5 // pred_check
        _
      $region10: #{tpu_custom_call.1} parent=5 // pred_check_branch
        %229 = sbr.rel (%p226) target = $region12
      $region11: #{tpu_custom_call.1} parent=5 // pred_region
        %s230 = ssub.s32 %s17, 1
        // Predicated region
        $region13: #{tpu_custom_call.1} parent=11 // pred_check
          %p231 = pneg %p64
        $region14: #{tpu_custom_call.1} parent=11 // pred_check_branch
          %233 = sbr.rel (%p231) target = $region16
        $region15: #{tpu_custom_call.1} parent=11 // pred_region
          _
        $region16: #{tpu_custom_call.1} parent=11 // pred_fallthru
          _
        // Predicated region
        $region17: #{tpu_custom_call.1} parent=11 // pred_check
          %p234 = pneg %p85
        $region18: #{tpu_custom_call.1} parent=11 // pred_check_branch
          %236 = sbr.rel (%p234) target = $region20
        $region19: #{tpu_custom_call.1} parent=11 // pred_region
          _
        $region20: #{tpu_custom_call.1} parent=11 // pred_fallthru
          _
        // Predicated region
        $region21: #{tpu_custom_call.1} parent=11 // pred_check
          %p237 = pneg %p106
        $region22: #{tpu_custom_call.1} parent=11 // pred_check_branch
          %239 = sbr.rel (%p237) target = $region24
        $region23: #{tpu_custom_call.1} parent=11 // pred_region
          _
        $region24: #{tpu_custom_call.1} parent=11 // pred_fallthru
          _
        // Predicated region
        $region25: #{tpu_custom_call.1} parent=11 // pred_check
          %p240 = pneg %p127
        $region26: #{tpu_custom_call.1} parent=11 // pred_check_branch
          %242 = sbr.rel (%p240) target = $region28
        $region27: #{tpu_custom_call.1} parent=11 // pred_region
          _
        $region28: #{tpu_custom_call.1} parent=11 // pred_fallthru
          _
        // Predicated region
        $region29: #{tpu_custom_call.1} parent=11 // pred_check
          %p243 = pneg %p148
        $region30: #{tpu_custom_call.1} parent=11 // pred_check_branch
          %245 = sbr.rel (%p243) target = $region32
        $region31: #{tpu_custom_call.1} parent=11 // pred_region
          _
        $region32: #{tpu_custom_call.1} parent=11 // pred_fallthru
          _
        // Predicated region
        $region33: #{tpu_custom_call.1} parent=11 // pred_check
          %p246 = pneg %p169
        $region34: #{tpu_custom_call.1} parent=11 // pred_check_branch
          %248 = sbr.rel (%p246) target = $region36
        $region35: #{tpu_custom_call.1} parent=11 // pred_region
          _
        $region36: #{tpu_custom_call.1} parent=11 // pred_fallthru
          _
        // Predicated region
        $region37: #{tpu_custom_call.1} parent=11 // pred_check
          %p249 = pneg %p190
        $region38: #{tpu_custom_call.1} parent=11 // pred_check_branch
          %251 = sbr.rel (%p249) target = $region40
        $region39: #{tpu_custom_call.1} parent=11 // pred_region
          _
        $region40: #{tpu_custom_call.1} parent=11 // pred_fallthru
          _
      $region12: #{tpu_custom_call.1} parent=5 // pred_fallthru
        _
      %p252 = scmp.lt.s32.totalorder %s17, 2
      // Predicated region
      $region41: #{tpu_custom_call.1} parent=5 // pred_check
        %p253 = pneg %p252
      $region42: #{tpu_custom_call.1} parent=5 // pred_check_branch
        %255 = sbr.rel (%p253) target = $region44
      $region43: #{tpu_custom_call.1} parent=5 // pred_region
        // Predicated region
        $region45: #{tpu_custom_call.1} parent=43 // pred_check
          %p256 = pneg %p37
        $region46: #{tpu_custom_call.1} parent=43 // pred_check_branch
          %258 = sbr.rel (%p256) target = $region48
        $region47: #{tpu_custom_call.1} parent=43 // pred_region
          %p259 = scmp.lt.s32.totalorder %s17, 1
          %s260 = scalar_select %p259, %s17, 1
          %s261 = smul.addr %s260, 8
          %s262 = scalar_lea.vmem %s0, %s261
        $region48: #{tpu_custom_call.1} parent=43 // pred_fallthru
          _
      $region44: #{tpu_custom_call.1} parent=5 // pred_fallthru
        _
      %p263 = scmp.le.s32.totalorder 1, %s17
      %p264 = scmp.lt.s32.totalorder %s17, 3
      %p265 = pnand %p263, %p264
      %p266 = pneg %p265
      // Predicated region
      $region49: #{tpu_custom_call.1} parent=5 // pred_check
        _
      $region50: #{tpu_custom_call.1} parent=5 // pred_check_branch
        %268 = sbr.rel (%p265) target = $region52
      $region51: #{tpu_custom_call.1} parent=5 // pred_region
        %s269 = ssub.s32 %s17, 1
        %p270 = scmp.lt.s32.totalorder %s22, 1
        %s271 = scalar_select %p270, %s22, 1
        %s272 = smul.addr %s271, 8
        %s273 = scalar_lea.vmem %s0, %s272
        %p274 = pneg %p43
        %p275 = pneg %p40
        %p276 = pneg %p64
        %p277 = pneg %p61
        %p278 = pneg %p85
        %p279 = pneg %p82
        %p280 = pneg %p106
        %p281 = pneg %p103
        %p282 = pneg %p127
        %p283 = pneg %p124
        %p284 = pneg %p148
        %p285 = pneg %p145
        %p286 = pneg %p169
        %p287 = pneg %p166
        %p288 = pneg %p190
        %p289 = pneg %p187
        %p290 = pneg %p216
        %p291 = pneg %p213
        %s292 = sand.u32 %s203, 1
        %s293 = scalar_lea.sflag [#allocation3], %s292
        %s294 = sand.u32 %s203, 1
        %s295 = smul.addr %s294, 8
        %s296 = scalar_lea.vmem [#allocation2], %s295
        %p297 = scmp.lt.s32.totalorder %s22, 1
        %s298 = scalar_select %p297, %s22, 1
        %s299 = smul.addr %s298, 8
        %s300 = scalar_lea.vmem %s0, %s299
        %v302 = vld [vmem:[%s300] sm:$0xff]
        %v303 = vpack.c.bf16 %v302, %v302
        %v304 = vld [vmem:[%s1] sm:$0xf]
        %v305 = vld [vmem:[%s1 + $0x4] sm:$0xf]
        %v306 = vld [vmem:[%s1 + $0x8] sm:$0xf]
        %v307 = vld [vmem:[%s1 + $0xc] sm:$0xf]
        %v308 = vld [vmem:[%s2] sm:$0x1]
        %v310 = vlaneseq
        %v311 = vshrl.u32 %v310, 7
        %v312 = vsub.s32 0, %v311
        %v313 = vrot.slane %v308, %v312
        %v319 = vunpack.c.l.b16 %v304
        %v320 = vunpack.c.l.b16 %v305
        %v321 = vunpack.c.l.b16 %v306
        %v322 = vunpack.c.l.b16 %v307
        %v323 = vpack.c.b16 %v320, %v319
        %v324 = vpack.c.b16 %v322, %v321
        %vm327 = vcmask 261120
        %v329 = vsel %vm327, %v303, 0
        %331 = vmatprep.subr.bf16.mxu0 0
        %332 = vmatpush1.bf16.msra.mxu0 0
        %333 = vmatprep.subr.bf16.mxu0 0
        %334 = vmatpush1.bf16.msra.mxu0 0
        %335 = vmatprep.subr.bf16.mxu0 0
        %336 = vmatpush1.bf16.msra.mxu0 0
        %337 = vmatprep.subr.bf16.mxu0 0
        %338 = vmatpush1.bf16.msra.mxu0 0
        %339 = vmatprep.subr.bf16.mxu0 0
        %340 = vmatpush1.bf16.msra.mxu0 0
        %341 = vmatprep.subr.bf16.mxu0 0
        %342 = vmatpush1.bf16.msra.mxu0 0
        %343 = vmatprep.subr.bf16.mxu0 0
        %344 = vmatpush1.bf16.msra.mxu0 %v324
        %345 = vmatprep.subr.bf16.mxu0 0
        %346 = vmatpush1.bf16.msra.mxu0 %v323
        %347 = vmatprep.subr.bf16.mxu0 0
        %348 = vmatpush2.bf16.msra.mxu0 0
        %349 = vmatprep.subr.bf16.mxu0 0
        %350 = vmatpush2.bf16.msra.mxu0 0
        %351 = vmatprep.subr.bf16.mxu0 0
        %352 = vmatpush2.bf16.msra.mxu0 0
        %353 = vmatprep.subr.bf16.mxu0 0
        %354 = vmatpush2.bf16.msra.mxu0 0
        %355 = vmatprep.subr.bf16.mxu0 0
        %356 = vmatpush2.bf16.msra.mxu0 0
        %357 = vmatprep.subr.bf16.mxu0 0
        %358 = vmatpush2.bf16.msra.mxu0 0
        %359 = vmatprep.subr.bf16.mxu0 0
        %360 = vmatpush2.bf16.msra.mxu0 0
        %361 = vmatprep.subr.bf16.mxu0 0
        %362 = vmatpush2.bf16.msra.mxu0 0
        %363 = vmatprep.mubr.bf16.mxu0 0
        %364 = vmatmul.mubr.bf16.gmra.mxu0 %v329
        %v365 = vpop.f32.mrf.mxu0
        %v366 = vadd.f32 %v313, %v365
        %v367 = vpop.f32.mrf.mxu0
        %v368 = vpop.f32.mrf.mxu0
        %v369 = vpop.f32.mrf.mxu0
        %370 = vdwg.mxu0
        %371 = vadd.xlane.f32.xlu0 %v366
        %v372 = vpop.xlane.xlu0 %371
        %v373 = vmul.f32 %v372, 0.03125
        %v374 = vmul.f32 %v366, %v366
        %375 = vadd.xlane.f32.xlu0 %v374
        %v376 = vpop.xlane.xlu0 %375
        %v377 = vmul.f32 %v376, 0.03125
        %v378 = vmul.f32 %v373, %v373
        %v379 = vsub.f32 %v377, %v378
        %v380 = vmax.f32 %v379, 0.0
        %v381 = vadd.f32 %v380, 1e-05
        %v382 = vrsqrt.pop %v381
        %v383 = vld [vmem:[%s3] sm:$0x1]
        %v385 = vlaneseq
        %v386 = vshrl.u32 %v385, 7
        %v387 = vsub.s32 0, %v386
        %v388 = vrot.slane %v383, %v387
        %v390 = vmul.f32 %v388, %v382
        %v391 = vld [vmem:[%s4] sm:$0x1]
        %v392 = vmul.f32 %v373, %v390
        %v394 = vlaneseq
        %v395 = vshrl.u32 %v394, 7
        %v396 = vsub.s32 0, %v395
        %v397 = vrot.slane %v391, %v396
        %v399 = vsub.f32 %v397, %v392
        %v400 = vmul.f32 %v366, %v390
        %v401 = vadd.f32 %v400, %v399
        %v402 = vmax.f32 %v401, 0.0
        %v403 = vpack.c.bf16 %v402, %v402
        %v404 = vld [vmem:[%s5] sm:$0xf]
        %v405 = vld [vmem:[%s5 + $0x4] sm:$0xf]
        %v406 = vld [vmem:[%s5 + $0x8] sm:$0xf]
        %v407 = vld [vmem:[%s5 + $0xc] sm:$0xf]
        %v408 = vld [vmem:[%s5 + $0x10] sm:$0xf]
        %v409 = vld [vmem:[%s5 + $0x14] sm:$0xf]
        %v410 = vld [vmem:[%s5 + $0x18] sm:$0xf]
        %v411 = vld [vmem:[%s5 + $0x1c] sm:$0xf]
        %v412 = vld [vmem:[%s5 + $0x20] sm:$0xf]
        %v413 = vld [vmem:[%s5 + $0x24] sm:$0xf]
        %v414 = vld [vmem:[%s5 + $0x28] sm:$0xf]
        %v415 = vld [vmem:[%s5 + $0x2c] sm:$0xf]
        %v416 = vld [vmem:[%s5 + $0x30] sm:$0xf]
        %v417 = vld [vmem:[%s5 + $0x34] sm:$0xf]
        %v418 = vld [vmem:[%s5 + $0x38] sm:$0xf]
        %v419 = vld [vmem:[%s5 + $0x3c] sm:$0xf]
        %v420 = vld [vmem:[%s7] sm:$0x1]
        %v422 = vlaneseq
        %v423 = vshrl.u32 %v422, 7
        %v424 = vsub.s32 0, %v423
        %v425 = vrot.slane %v420, %v424
        %v443 = vunpack.c.l.b16 %v404
        %v444 = vunpack.c.l.b16 %v405
        %v445 = vunpack.c.l.b16 %v406
        %v446 = vunpack.c.l.b16 %v407
        %v447 = vunpack.c.l.b16 %v408
        %v448 = vunpack.c.l.b16 %v409
        %v449 = vunpack.c.l.b16 %v410
        %v450 = vunpack.c.l.b16 %v411
        %v451 = vunpack.c.l.b16 %v412
        %v452 = vunpack.c.l.b16 %v413
        %v453 = vunpack.c.l.b16 %v414
        %v454 = vunpack.c.l.b16 %v415
        %v455 = vunpack.c.l.b16 %v416
        %v456 = vunpack.c.l.b16 %v417
        %v457 = vunpack.c.l.b16 %v418
        %v458 = vunpack.c.l.b16 %v419
        %v459 = vpack.c.b16 %v444, %v443
        %v460 = vpack.c.b16 %v446, %v445
        %v461 = vpack.c.b16 %v448, %v447
        %v462 = vpack.c.b16 %v450, %v449
        %v463 = vpack.c.b16 %v452, %v451
        %v464 = vpack.c.b16 %v454, %v453
        %v465 = vpack.c.b16 %v456, %v455
        %v466 = vpack.c.b16 %v458, %v457
        %475 = vmatprep.subr.bf16.mxu0 0
        %476 = vmatpush1.bf16.msra.mxu0 %v466
        %477 = vmatprep.subr.bf16.mxu0 0
        %478 = vmatpush1.bf16.msra.mxu0 %v465
        %479 = vmatprep.subr.bf16.mxu0 0
        %480 = vmatpush1.bf16.msra.mxu0 %v464
        %481 = vmatprep.subr.bf16.mxu0 0
        %482 = vmatpush1.bf16.msra.mxu0 %v463
        %483 = vmatprep.subr.bf16.mxu0 0
        %484 = vmatpush1.bf16.msra.mxu0 %v462
        %485 = vmatprep.subr.bf16.mxu0 0
        %486 = vmatpush1.bf16.msra.mxu0 %v461
        %487 = vmatprep.subr.bf16.mxu0 0
        %488 = vmatpush1.bf16.msra.mxu0 %v460
        %489 = vmatprep.subr.bf16.mxu0 0
        %490 = vmatpush1.bf16.msra.mxu0 %v459
        %491 = vmatprep.subr.bf16.mxu0 0
        %492 = vmatpush2.bf16.msra.mxu0 0
        %493 = vmatprep.subr.bf16.mxu0 0
        %494 = vmatpush2.bf16.msra.mxu0 0
        %495 = vmatprep.subr.bf16.mxu0 0
        %496 = vmatpush2.bf16.msra.mxu0 0
        %497 = vmatprep.subr.bf16.mxu0 0
        %498 = vmatpush2.bf16.msra.mxu0 0
        %499 = vmatprep.subr.bf16.mxu0 0
        %500 = vmatpush2.bf16.msra.mxu0 0
        %501 = vmatprep.subr.bf16.mxu0 0
        %502 = vmatpush2.bf16.msra.mxu0 0
        %503 = vmatprep.subr.bf16.mxu0 0
        %504 = vmatpush2.bf16.msra.mxu0 0
        %505 = vmatprep.subr.bf16.mxu0 0
        %506 = vmatpush2.bf16.msra.mxu0 0
        %507 = vmatprep.mubr.bf16.mxu0 0
        %508 = vmatmul.mubr.bf16.gmra.mxu0 %v403
        %v509 = vpop.f32.mrf.mxu0
        %v510 = vadd.f32 %v425, %v509
        %v511 = vpop.f32.mrf.mxu0
        %v512 = vpop.f32.mrf.mxu0
        %v513 = vpop.f32.mrf.mxu0
        %514 = vdwg.mxu0
        %v515 = vld [vmem:[%s6] sm:$0xf]
        %v516 = vld [vmem:[%s6 + $0x4] sm:$0xf]
        %v517 = vld [vmem:[%s6 + $0x8] sm:$0xf]
        %v518 = vld [vmem:[%s6 + $0xc] sm:$0xf]
        %v523 = vunpack.c.l.b16 %v515
        %v524 = vunpack.c.l.b16 %v516
        %v525 = vunpack.c.l.b16 %v517
        %v526 = vunpack.c.l.b16 %v518
        %v527 = vpack.c.b16 %v524, %v523
        %v528 = vpack.c.b16 %v526, %v525
        %531 = vmatprep.subr.bf16.mxu0 0
        %532 = vmatpush1.bf16.msra.mxu0 0
        %533 = vmatprep.subr.bf16.mxu0 0
        %534 = vmatpush1.bf16.msra.mxu0 0
        %535 = vmatprep.subr.bf16.mxu0 0
        %536 = vmatpush1.bf16.msra.mxu0 0
        %537 = vmatprep.subr.bf16.mxu0 0
        %538 = vmatpush1.bf16.msra.mxu0 0
        %539 = vmatprep.subr.bf16.mxu0 0
        %540 = vmatpush1.bf16.msra.mxu0 0
        %541 = vmatprep.subr.bf16.mxu0 0
        %542 = vmatpush1.bf16.msra.mxu0 0
        %543 = vmatprep.subr.bf16.mxu0 0
        %544 = vmatpush1.bf16.msra.mxu0 %v528
        %545 = vmatprep.subr.bf16.mxu0 0
        %546 = vmatpush1.bf16.msra.mxu0 %v527
        %547 = vmatprep.subr.bf16.mxu0 0
        %548 = vmatpush2.bf16.msra.mxu0 0
        %549 = vmatprep.subr.bf16.mxu0 0
        %550 = vmatpush2.bf16.msra.mxu0 0
        %551 = vmatprep.subr.bf16.mxu0 0
        %552 = vmatpush2.bf16.msra.mxu0 0
        %553 = vmatprep.subr.bf16.mxu0 0
        %554 = vmatpush2.bf16.msra.mxu0 0
        %555 = vmatprep.subr.bf16.mxu0 0
        %556 = vmatpush2.bf16.msra.mxu0 0
        %557 = vmatprep.subr.bf16.mxu0 0
        %558 = vmatpush2.bf16.msra.mxu0 0
        %559 = vmatprep.subr.bf16.mxu0 0
        %560 = vmatpush2.bf16.msra.mxu0 0
        %561 = vmatprep.subr.bf16.mxu0 0
        %562 = vmatpush2.bf16.msra.mxu0 0
        %563 = vmatprep.mubr.bf16.mxu0 0
        %564 = vmatmul.mubr.bf16.gmra.mxu0 %v329
        %v565 = vpop.f32.mrf.mxu0
        %v566 = vadd.f32 0.0, %v565
        %v567 = vpop.f32.mrf.mxu0
        %v568 = vpop.f32.mrf.mxu0
        %v569 = vpop.f32.mrf.mxu0
        %570 = vdwg.mxu0
        %v571 = vadd.f32 %v510, %v566
        %572 = vst.msk [vmem:[%s296] sm:$0xff] %vm327, %v571
        %s573 = sand.u32 %s203, 1
        %s574 = scalar_lea.sflag [#allocation3], %s573
        %s575 = sand.u32 %s203, 1
        %s576 = smul.addr %s575, 8
        %s577 = scalar_lea.vmem [#allocation2], %s576
        // Predicated region
        $region53: #{tpu_custom_call.1} parent=51 // pred_check
          %p578 = pneg %p213
        $region54: #{tpu_custom_call.1} parent=51 // pred_check_branch
          %580 = sbr.rel (%p578) target = $region56
        $region55: #{tpu_custom_call.1} parent=51 // pred_region
          %s582 = ssub.s32 128, 128
          %583 = vsyncadd %s574, %s582
          %s584 = smul.addr %s22, 128
          %s585 = scalar_lea.hbm %s8, %s584
          %s587 = sshll.u32 %s577, 4
          %s588 = int_to_ptr.vmem [resolvable:$true] %s587
          %590 = dma.vmem_to_hbm [thread:$0]  %s588, 128, %s585, %s574
        $region56: #{tpu_custom_call.1} parent=51 // pred_fallthru
          _
      $region52: #{tpu_custom_call.1} parent=5 // pred_fallthru
        _
      %p591 = scmp.le.s32.totalorder 2, %s17
      // Predicated region
      $region57: #{tpu_custom_call.1} parent=5 // pred_check
        %p592 = pneg %p591
      $region58: #{tpu_custom_call.1} parent=5 // pred_check_branch
        %594 = sbr.rel (%p592) target = $region60
      $region59: #{tpu_custom_call.1} parent=5 // pred_region
        %s595 = ssub.s32 %s17, 2
        // Predicated region
        $region61: #{tpu_custom_call.1} parent=59 // pred_check
          %p596 = pneg %p219
        $region62: #{tpu_custom_call.1} parent=59 // pred_check_branch
          %598 = sbr.rel (%p596) target = $region64
        $region63: #{tpu_custom_call.1} parent=59 // pred_region
          %s599 = sand.u32 %s204, 1
          %s600 = scalar_lea.sflag [#allocation3], %s599
          %s601 = sand.u32 %s204, 1
          %s602 = smul.addr %s601, 8
          %s603 = scalar_lea.vmem [#allocation2], %s602
          %604 = dma.done %s600, 128
        $region64: #{tpu_custom_call.1} parent=59 // pred_fallthru
          _
      $region60: #{tpu_custom_call.1} parent=5 // pred_fallthru
        _
    $region6: #{tpu_custom_call.1} parent=1 // loop_footer
      %s21 = sadd.s32 1, %s17
    $region7: #{tpu_custom_call.1} parent=1 // loop_footer_branch
      %16 = sbr.rel target = $region3
    $region8: #{tpu_custom_call.1} parent=1 // loop_exit
      _
    %605 = vsyncpa [#allocation3], 1
    %s606 = scalar_lea.sflag [#allocation3], 1
    %607 = vsyncpa %s606, 1

</llo_original>
